<compile_context>
chip_gen: v7x
topology: tpu7x:2x2x1
jax: 0.10.0
libtpu: 0.0.40
codegen_flags: <defaults>
</compile_context>

<pallas_src>
import functools

import jax
import jax.numpy as jnp
import numpy as np
from jax.experimental import pallas as pl
from jax.experimental.pallas import tpu as pltpu

NEG_SLOPE = 0.01  # nn.LeakyReLU() default negative_slope


def _dwconv_kernel(x_ref, w_ref, b_ref, o_ref, xp_ref, *,
                   bn, cg, kpl, kh_size, kw_size, h, w, ho, wo, pad, stride):
    """One (batch block, channel group) per grid step.

    x_ref : (bn, cg, H, W)           VMEM  unpadded input channels of this group
    w_ref : (Cout*kH*kW,)            SMEM  flat per-output-channel taps
    b_ref : (Cout,)                  SMEM  bias
    o_ref : (bn, cg*kpl, Ho, Wo)     VMEM  output slab of this group
    xp_ref: (cg, H+2p, W+2p)         VMEM  scratch, padded copy (reused per b)
    """
    hp = h + 2 * pad
    wp = w + 2 * pad
    ntaps = kh_size * kw_size

    g = pl.program_id(1)              # channel-group index
    co_base = g * (cg * kpl)          # first global output channel of this block

    # ---- zero only the pad halo; the interior is overwritten for every b ----
    if pad > 0:
        zdt = xp_ref.dtype
        xp_ref[:, 0:pad, :] = jnp.zeros((cg, pad, wp), zdt)          # top rows
        xp_ref[:, hp - pad:hp, :] = jnp.zeros((cg, pad, wp), zdt)    # bottom rows
        xp_ref[:, :, 0:pad] = jnp.zeros((cg, hp, pad), zdt)          # left cols
        xp_ref[:, :, wp - pad:wp] = jnp.zeros((cg, hp, pad), zdt)    # right cols

    def tap_window(c, kh, kw):
        # ref-level (optionally strided) window read for one tap
        if stride == 1:
            return xp_ref[c, pl.ds(kh, ho), pl.ds(kw, wo)]
        return xp_ref[c, pl.ds(kh, ho, stride=stride),
                      pl.ds(kw, wo, stride=stride)]

    for b in range(bn):
        # paste this batch element's channel group into the padded scratch
        xp_ref[:, pad:pad + h, pad:pad + w] = x_ref[b]

        for c in range(cg):
            # taps in the OUTER loop: one live window + kpl live accumulators
            accs = [jnp.zeros((ho, wo), jnp.float32) for _ in range(kpl)]
            t = 0
            for kh in range(kh_size):
                for kw in range(kw_size):
                    win = tap_window(c, kh, kw).astype(jnp.float32)
                    for m in range(kpl):
                        co = co_base + c * kpl + m        # global output channel
                        accs[m] = accs[m] + win * w_ref[co * ntaps + t]
                    t += 1
            for m in range(kpl):
                co = co_base + c * kpl + m
                v = accs[m] + b_ref[co]
                v = jnp.where(v >= 0, v, NEG_SLOPE * v)              # LeakyReLU
                o_ref[b, c * kpl + m] = v.astype(o_ref.dtype)        # direct store


def _vmem_budget_and_limit():
    """Generation-aware VMEM sizing: derive the scoped limit and the live-block
    footprint budget from the chip's physical VMEM (v5e/v6e 128 MiB, v7x 64 MiB)."""
    try:
        cap = int(pltpu.get_tpu_info().vmem_capacity_bytes)
    except Exception:
        cap = 64 * 1024 * 1024  # conservative fallback (v7x physical)
    limit = (cap * 3) // 4       # scoped VMEM limit we request from the compiler
    budget = (limit * 3) // 4    # target live footprint (leave compiler headroom)
    return budget, limit


def _pick_blocks(n, c, h, w, hp, wp, ho, wo, kpl, itemsize, budget):
    """Pick (batch_block, channels_per_group).

    Footprint accounts for double-buffered input, double-buffered output
    (which is kpl x larger than the input block) and the padded scratch.
    Grow channels first (contiguous NCHW DMA), then batch.  Only split into
    extra grid steps if the maximal block would leave a single grid step
    (so megacore/v7x still gets >= 2 parallel steps when possible)."""
    def footprint(bn, cg):
        inp = 2 * bn * cg * h * w * itemsize            # 2x buffered input block
        out = 2 * bn * cg * kpl * ho * wo * itemsize    # 2x buffered output block
        scr = cg * hp * wp * itemsize                   # padded scratch (single)
        return inp + out + scr

    div_c = [d for d in range(1, c + 1) if c % d == 0]
    div_n = [d for d in range(1, n + 1) if n % d == 0]

    fit_c = [d for d in div_c if footprint(1, d) <= budget]
    cg = max(fit_c) if fit_c else 1
    fit_n = [d for d in div_n if footprint(d, cg) <= budget]
    bn = max(fit_n) if fit_n else 1

    if (n // bn) * (c // cg) == 1:      # single grid step: split for megacore
        if n > 1:
            bn = max(d for d in div_n if n // d >= 2)
        elif c > 1:
            cg = max(d for d in div_c if c // d >= 2)
    return bn, cg


def depthwise_conv_forward(x_nchw, weight, bias, *, kernels_per_layer,
                           kernel_size, padding, stride):
    """x_nchw: (N, C, H, W);  weight: (C*kpl, 1, kH, kW);  bias: (C*kpl,)."""
    n, c, h, w = x_nchw.shape
    kpl = kernels_per_layer
    kh = kw = kernel_size
    cout = c * kpl
    ho = (h + 2 * padding - kh) // stride + 1
    wo = (w + 2 * padding - kw) // stride + 1
    hp, wp = h + 2 * padding, w + 2 * padding

    budget, vmem_limit = _vmem_budget_and_limit()
    bn, cg = _pick_blocks(n, c, h, w, hp, wp, ho, wo, kpl,
                          x_nchw.dtype.itemsize, budget)
    groups = c // cg

    # tiny parameter repacks only -- no full-tensor HBM passes on x
    w_flat = weight.reshape(cout * kh * kw).astype(jnp.float32)   # 1-D SMEM taps
    b_flat = bias.astype(jnp.float32)                             # SMEM bias

    kernel = functools.partial(
        _dwconv_kernel, bn=bn, cg=cg, kpl=kpl, kh_size=kh, kw_size=kw,
        h=h, w=w, ho=ho, wo=wo, pad=padding, stride=stride)

    return pl.pallas_call(
        kernel,
        out_shape=jax.ShapeDtypeStruct((n, cout, ho, wo), x_nchw.dtype),
        grid_spec=pltpu.PrefetchScalarGridSpec(
            num_scalar_prefetch=0,
            grid=(n // bn, groups),
            in_specs=[
                pl.BlockSpec((bn, cg, h, w), lambda i, g: (i, g, 0, 0)),
                pl.BlockSpec(memory_space=pltpu.MemorySpace.SMEM),
                pl.BlockSpec(memory_space=pltpu.MemorySpace.SMEM),
            ],
            out_specs=pl.BlockSpec((bn, cg * kpl, ho, wo),
                                   lambda i, g: (i, g, 0, 0)),
            scratch_shapes=[pltpu.VMEM((cg, hp, wp), x_nchw.dtype)],
        ),
        compiler_params=pltpu.CompilerParams(
            dimension_semantics=("parallel", "parallel"),
            vmem_limit_bytes=vmem_limit),
    )(x_nchw, w_flat, b_flat)


def reference_forward(x_nchw, weight, bias, *, kernels_per_layer, kernel_size,
                      padding, stride):
    """Pure-JAX reference (lax grouped conv) for correctness check."""
    c = x_nchw.shape[1]
    out = jax.lax.conv_general_dilated(
        x_nchw, weight,
        window_strides=(stride, stride),
        padding=((padding, padding), (padding, padding)),
        dimension_numbers=("NCHW", "OIHW", "NCHW"),
        feature_group_count=c,
    ) + bias[None, :, None, None]
    return jnp.where(out >= 0, out, NEG_SLOPE * out)


if __name__ == "__main__":
    # module config: depthwise_conv(nin=4, kernels_per_layer=2, kernel_size=3,
    #                               padding=1, stride=1)
    nin, kpl, ksize, pad, stride = 4, 2, 3, 1, 1

    key = jax.random.PRNGKey(0)
    kx, kw_, kb = jax.random.split(key, 3)

    x = jax.random.normal(kx, (2, nin, 16, 16), dtype=jnp.float32)
    # deterministic synthetic parameters (Conv2d weight: (nin*kpl, 1, kH, kW))
    fan_in = 1 * ksize * ksize
    bound = 1.0 / np.sqrt(fan_in)
    weight = jax.random.uniform(kw_, (nin * kpl, 1, ksize, ksize),
                                minval=-bound, maxval=bound, dtype=jnp.float32)
    bias = jax.random.uniform(kb, (nin * kpl,), minval=-bound, maxval=bound,
                              dtype=jnp.float32)

    out = depthwise_conv_forward(x, weight, bias, kernels_per_layer=kpl,
                                 kernel_size=ksize, padding=pad, stride=stride)
    out = jax.block_until_ready(out)

    ref = reference_forward(x, weight, bias, kernels_per_layer=kpl,
                            kernel_size=ksize, padding=pad, stride=stride)
    np.testing.assert_allclose(np.asarray(out), np.asarray(ref),
                               rtol=1e-5, atol=1e-5)
    print("KERNEL_OK")
</pallas_src>

<mosaic_0001>
module attributes {stable_mosaic.version = 11 : i64} {
  func.func @_dwconv_kernel(%arg0: i32, %arg1: i32, %arg2: memref<1x4x16x16xf32, #tpu.memory_space<vmem>>, %arg3: memref<72xf32, #tpu.memory_space<smem>>, %arg4: memref<8xf32, #tpu.memory_space<smem>>, %arg5: memref<1x8x16x16xf32, #tpu.memory_space<vmem>>, %arg6: memref<4x18x18xf32, #tpu.memory_space<vmem>>) attributes {dimension_semantics = [#tpu.dimension_semantics<parallel>, #tpu.dimension_semantics<parallel>], iteration_bounds = array<i64: 2, 1>, scalar_prefetch = 0 : i64, scratch_operands = 1 : i64, tpu.core_type = #tpu.core_type<tc>, window_params = [{transform_indices = @transform_0, window_bounds = array<i64: 1, 4, 16, 16>}, {transform_indices = @transform_1, window_bounds = array<i64: 72>}, {transform_indices = @transform_2, window_bounds = array<i64: 8>}, {transform_indices = @transform_3, window_bounds = array<i64: 1, 8, 16, 16>}]} {
    %c8_i32 = arith.constant 8 : i32
    %0 = arith.muli %arg1, %c8_i32 : i32
    %cst = arith.constant 0.000000e+00 : f32
    %1 = vector.broadcast %cst : f32 to vector<4x1x18xf32>
    %c0 = arith.constant 0 : index
    %c0_0 = arith.constant 0 : index
    %c0_1 = arith.constant 0 : index
    %2 = vector.load %arg6[%c0, %c0_0, %c0_1] : memref<4x18x18xf32, #tpu.memory_space<vmem>>, vector<4x1x18xf32>
    tpu.vector_store %arg6[%c0, %c0_0, %c0_1], %1 {strides = array<i32>} : memref<4x18x18xf32, #tpu.memory_space<vmem>>, vector<4x1x18xf32>,
    %cst_2 = arith.constant 0.000000e+00 : f32
    %3 = vector.broadcast %cst_2 : f32 to vector<4x1x18xf32>
    %c0_3 = arith.constant 0 : index
    %c17 = arith.constant 17 : index
    %c0_4 = arith.constant 0 : index
    %4 = vector.load %arg6[%c0_3, %c17, %c0_4] : memref<4x18x18xf32, #tpu.memory_space<vmem>>, vector<4x1x18xf32>
    tpu.vector_store %arg6[%c0_3, %c17, %c0_4], %3 {strides = array<i32>} : memref<4x18x18xf32, #tpu.memory_space<vmem>>, vector<4x1x18xf32>,
    %cst_5 = arith.constant 0.000000e+00 : f32
    %5 = vector.broadcast %cst_5 : f32 to vector<4x18x1xf32>
    %c0_6 = arith.constant 0 : index
    %c0_7 = arith.constant 0 : index
    %c0_8 = arith.constant 0 : index
    %6 = vector.load %arg6[%c0_6, %c0_7, %c0_8] : memref<4x18x18xf32, #tpu.memory_space<vmem>>, vector<4x18x1xf32>
    tpu.vector_store %arg6[%c0_6, %c0_7, %c0_8], %5 {strides = array<i32>} : memref<4x18x18xf32, #tpu.memory_space<vmem>>, vector<4x18x1xf32>,
    %cst_9 = arith.constant 0.000000e+00 : f32
    %7 = vector.broadcast %cst_9 : f32 to vector<4x18x1xf32>
    %c0_10 = arith.constant 0 : index
    %c0_11 = arith.constant 0 : index
    %c17_12 = arith.constant 17 : index
    %8 = vector.load %arg6[%c0_10, %c0_11, %c17_12] : memref<4x18x18xf32, #tpu.memory_space<vmem>>, vector<4x18x1xf32>
    tpu.vector_store %arg6[%c0_10, %c0_11, %c17_12], %7 {strides = array<i32>} : memref<4x18x18xf32, #tpu.memory_space<vmem>>, vector<4x18x1xf32>,
    %c0_13 = arith.constant 0 : index
    %c0_14 = arith.constant 0 : index
    %c0_15 = arith.constant 0 : index
    %c0_16 = arith.constant 0 : index
    %9 = vector.load %arg2[%c0_13, %c0_14, %c0_15, %c0_16] : memref<1x4x16x16xf32, #tpu.memory_space<vmem>>, vector<1x4x16x16xf32>
    %10 = vector.shape_cast %9 : vector<1x4x16x16xf32> to vector<4x16x16xf32>
    %c0_17 = arith.constant 0 : index
    %c1 = arith.constant 1 : index
    %c1_18 = arith.constant 1 : index
    %11 = vector.load %arg6[%c0_17, %c1, %c1_18] : memref<4x18x18xf32, #tpu.memory_space<vmem>>, vector<4x16x16xf32>
    tpu.vector_store %arg6[%c0_17, %c1, %c1_18], %10 {strides = array<i32>} : memref<4x18x18xf32, #tpu.memory_space<vmem>>, vector<4x16x16xf32>,
    %cst_19 = arith.constant 0.000000e+00 : f32
    %12 = vector.broadcast %cst_19 : f32 to vector<16x16xf32>
    %cst_20 = arith.constant 0.000000e+00 : f32
    %13 = vector.broadcast %cst_20 : f32 to vector<16x16xf32>
    %c0_21 = arith.constant 0 : index
    %c0_22 = arith.constant 0 : index
    %c0_23 = arith.constant 0 : index
    %14 = vector.load %arg6[%c0_21, %c0_22, %c0_23] : memref<4x18x18xf32, #tpu.memory_space<vmem>>, vector<1x16x16xf32>
    %15 = vector.shape_cast %14 : vector<1x16x16xf32> to vector<16x16xf32>
    %c0_i32 = arith.constant 0 : i32
    %16 = arith.addi %0, %c0_i32 : i32
    %c0_i32_24 = arith.constant 0 : i32
    %17 = arith.addi %16, %c0_i32_24 : i32
    %c9_i32 = arith.constant 9 : i32
    %18 = arith.muli %17, %c9_i32 : i32
    %c0_i32_25 = arith.constant 0 : i32
    %19 = arith.addi %18, %c0_i32_25 : i32
    %20 = arith.index_cast %19 : i32 to index
    %21 = memref.load %arg3[%20] : memref<72xf32, #tpu.memory_space<smem>>
    %22 = vector.broadcast %21 : f32 to vector<16x16xf32>
    %23 = arith.mulf %15, %22 : vector<16x16xf32>
    %24 = arith.addf %12, %23 : vector<16x16xf32>
    %c0_i32_26 = arith.constant 0 : i32
    %25 = arith.addi %0, %c0_i32_26 : i32
    %c1_i32 = arith.constant 1 : i32
    %26 = arith.addi %25, %c1_i32 : i32
    %c9_i32_27 = arith.constant 9 : i32
    %27 = arith.muli %26, %c9_i32_27 : i32
    %c0_i32_28 = arith.constant 0 : i32
    %28 = arith.addi %27, %c0_i32_28 : i32
    %29 = arith.index_cast %28 : i32 to index
    %30 = memref.load %arg3[%29] : memref<72xf32, #tpu.memory_space<smem>>
    %31 = vector.broadcast %30 : f32 to vector<16x16xf32>
    %32 = arith.mulf %15, %31 : vector<16x16xf32>
    %33 = arith.addf %13, %32 : vector<16x16xf32>
    %c0_29 = arith.constant 0 : index
    %c0_30 = arith.constant 0 : index
    %c1_31 = arith.constant 1 : index
    %34 = vector.load %arg6[%c0_29, %c0_30, %c1_31] : memref<4x18x18xf32, #tpu.memory_space<vmem>>, vector<1x16x16xf32>
    %35 = vector.shape_cast %34 : vector<1x16x16xf32> to vector<16x16xf32>
    %c0_i32_32 = arith.constant 0 : i32
    %36 = arith.addi %0, %c0_i32_32 : i32
    %c0_i32_33 = arith.constant 0 : i32
    %37 = arith.addi %36, %c0_i32_33 : i32
    %c9_i32_34 = arith.constant 9 : i32
    %38 = arith.muli %37, %c9_i32_34 : i32
    %c1_i32_35 = arith.constant 1 : i32
    %39 = arith.addi %38, %c1_i32_35 : i32
    %40 = arith.index_cast %39 : i32 to index
    %41 = memref.load %arg3[%40] : memref<72xf32, #tpu.memory_space<smem>>
    %42 = vector.broadcast %41 : f32 to vector<16x16xf32>
    %43 = arith.mulf %35, %42 : vector<16x16xf32>
    %44 = arith.addf %24, %43 : vector<16x16xf32>
    %c0_i32_36 = arith.constant 0 : i32
    %45 = arith.addi %0, %c0_i32_36 : i32
    %c1_i32_37 = arith.constant 1 : i32
    %46 = arith.addi %45, %c1_i32_37 : i32
    %c9_i32_38 = arith.constant 9 : i32
    %47 = arith.muli %46, %c9_i32_38 : i32
    %c1_i32_39 = arith.constant 1 : i32
    %48 = arith.addi %47, %c1_i32_39 : i32
    %49 = arith.index_cast %48 : i32 to index
    %50 = memref.load %arg3[%49] : memref<72xf32, #tpu.memory_space<smem>>
    %51 = vector.broadcast %50 : f32 to vector<16x16xf32>
    %52 = arith.mulf %35, %51 : vector<16x16xf32>
    %53 = arith.addf %33, %52 : vector<16x16xf32>
    %c0_40 = arith.constant 0 : index
    %c0_41 = arith.constant 0 : index
    %c2 = arith.constant 2 : index
    %54 = vector.load %arg6[%c0_40, %c0_41, %c2] : memref<4x18x18xf32, #tpu.memory_space<vmem>>, vector<1x16x16xf32>
    %55 = vector.shape_cast %54 : vector<1x16x16xf32> to vector<16x16xf32>
    %c0_i32_42 = arith.constant 0 : i32
    %56 = arith.addi %0, %c0_i32_42 : i32
    %c0_i32_43 = arith.constant 0 : i32
    %57 = arith.addi %56, %c0_i32_43 : i32
    %c9_i32_44 = arith.constant 9 : i32
    %58 = arith.muli %57, %c9_i32_44 : i32
    %c2_i32 = arith.constant 2 : i32
    %59 = arith.addi %58, %c2_i32 : i32
    %60 = arith.index_cast %59 : i32 to index
    %61 = memref.load %arg3[%60] : memref<72xf32, #tpu.memory_space<smem>>
    %62 = vector.broadcast %61 : f32 to vector<16x16xf32>
    %63 = arith.mulf %55, %62 : vector<16x16xf32>
    %64 = arith.addf %44, %63 : vector<16x16xf32>
    %c0_i32_45 = arith.constant 0 : i32
    %65 = arith.addi %0, %c0_i32_45 : i32
    %c1_i32_46 = arith.constant 1 : i32
    %66 = arith.addi %65, %c1_i32_46 : i32
    %c9_i32_47 = arith.constant 9 : i32
    %67 = arith.muli %66, %c9_i32_47 : i32
    %c2_i32_48 = arith.constant 2 : i32
    %68 = arith.addi %67, %c2_i32_48 : i32
    %69 = arith.index_cast %68 : i32 to index
    %70 = memref.load %arg3[%69] : memref<72xf32, #tpu.memory_space<smem>>
    %71 = vector.broadcast %70 : f32 to vector<16x16xf32>
    %72 = arith.mulf %55, %71 : vector<16x16xf32>
    %73 = arith.addf %53, %72 : vector<16x16xf32>
    %c0_49 = arith.constant 0 : index
    %c1_50 = arith.constant 1 : index
    %c0_51 = arith.constant 0 : index
    %74 = vector.load %arg6[%c0_49, %c1_50, %c0_51] : memref<4x18x18xf32, #tpu.memory_space<vmem>>, vector<1x16x16xf32>
    %75 = vector.shape_cast %74 : vector<1x16x16xf32> to vector<16x16xf32>
    %c0_i32_52 = arith.constant 0 : i32
    %76 = arith.addi %0, %c0_i32_52 : i32
    %c0_i32_53 = arith.constant 0 : i32
    %77 = arith.addi %76, %c0_i32_53 : i32
    %c9_i32_54 = arith.constant 9 : i32
    %78 = arith.muli %77, %c9_i32_54 : i32
    %c3_i32 = arith.constant 3 : i32
    %79 = arith.addi %78, %c3_i32 : i32
    %80 = arith.index_cast %79 : i32 to index
    %81 = memref.load %arg3[%80] : memref<72xf32, #tpu.memory_space<smem>>
    %82 = vector.broadcast %81 : f32 to vector<16x16xf32>
    %83 = arith.mulf %75, %82 : vector<16x16xf32>
    %84 = arith.addf %64, %83 : vector<16x16xf32>
    %c0_i32_55 = arith.constant 0 : i32
    %85 = arith.addi %0, %c0_i32_55 : i32
    %c1_i32_56 = arith.constant 1 : i32
    %86 = arith.addi %85, %c1_i32_56 : i32
    %c9_i32_57 = arith.constant 9 : i32
    %87 = arith.muli %86, %c9_i32_57 : i32
    %c3_i32_58 = arith.constant 3 : i32
    %88 = arith.addi %87, %c3_i32_58 : i32
    %89 = arith.index_cast %88 : i32 to index
    %90 = memref.load %arg3[%89] : memref<72xf32, #tpu.memory_space<smem>>
    %91 = vector.broadcast %90 : f32 to vector<16x16xf32>
    %92 = arith.mulf %75, %91 : vector<16x16xf32>
    %93 = arith.addf %73, %92 : vector<16x16xf32>
    %c0_59 = arith.constant 0 : index
    %c1_60 = arith.constant 1 : index
    %c1_61 = arith.constant 1 : index
    %94 = vector.load %arg6[%c0_59, %c1_60, %c1_61] : memref<4x18x18xf32, #tpu.memory_space<vmem>>, vector<1x16x16xf32>
    %95 = vector.shape_cast %94 : vector<1x16x16xf32> to vector<16x16xf32>
    %c0_i32_62 = arith.constant 0 : i32
    %96 = arith.addi %0, %c0_i32_62 : i32
    %c0_i32_63 = arith.constant 0 : i32
    %97 = arith.addi %96, %c0_i32_63 : i32
    %c9_i32_64 = arith.constant 9 : i32
    %98 = arith.muli %97, %c9_i32_64 : i32
    %c4_i32 = arith.constant 4 : i32
    %99 = arith.addi %98, %c4_i32 : i32
    %100 = arith.index_cast %99 : i32 to index
    %101 = memref.load %arg3[%100] : memref<72xf32, #tpu.memory_space<smem>>
    %102 = vector.broadcast %101 : f32 to vector<16x16xf32>
    %103 = arith.mulf %95, %102 : vector<16x16xf32>
    %104 = arith.addf %84, %103 : vector<16x16xf32>
    %c0_i32_65 = arith.constant 0 : i32
    %105 = arith.addi %0, %c0_i32_65 : i32
    %c1_i32_66 = arith.constant 1 : i32
    %106 = arith.addi %105, %c1_i32_66 : i32
    %c9_i32_67 = arith.constant 9 : i32
    %107 = arith.muli %106, %c9_i32_67 : i32
    %c4_i32_68 = arith.constant 4 : i32
    %108 = arith.addi %107, %c4_i32_68 : i32
    %109 = arith.index_cast %108 : i32 to index
    %110 = memref.load %arg3[%109] : memref<72xf32, #tpu.memory_space<smem>>
    %111 = vector.broadcast %110 : f32 to vector<16x16xf32>
    %112 = arith.mulf %95, %111 : vector<16x16xf32>
    %113 = arith.addf %93, %112 : vector<16x16xf32>
    %c0_69 = arith.constant 0 : index
    %c1_70 = arith.constant 1 : index
    %c2_71 = arith.constant 2 : index
    %114 = vector.load %arg6[%c0_69, %c1_70, %c2_71] : memref<4x18x18xf32, #tpu.memory_space<vmem>>, vector<1x16x16xf32>
    %115 = vector.shape_cast %114 : vector<1x16x16xf32> to vector<16x16xf32>
    %c0_i32_72 = arith.constant 0 : i32
    %116 = arith.addi %0, %c0_i32_72 : i32
    %c0_i32_73 = arith.constant 0 : i32
    %117 = arith.addi %116, %c0_i32_73 : i32
    %c9_i32_74 = arith.constant 9 : i32
    %118 = arith.muli %117, %c9_i32_74 : i32
    %c5_i32 = arith.constant 5 : i32
    %119 = arith.addi %118, %c5_i32 : i32
    %120 = arith.index_cast %119 : i32 to index
    %121 = memref.load %arg3[%120] : memref<72xf32, #tpu.memory_space<smem>>
    %122 = vector.broadcast %121 : f32 to vector<16x16xf32>
    %123 = arith.mulf %115, %122 : vector<16x16xf32>
    %124 = arith.addf %104, %123 : vector<16x16xf32>
    %c0_i32_75 = arith.constant 0 : i32
    %125 = arith.addi %0, %c0_i32_75 : i32
    %c1_i32_76 = arith.constant 1 : i32
    %126 = arith.addi %125, %c1_i32_76 : i32
    %c9_i32_77 = arith.constant 9 : i32
    %127 = arith.muli %126, %c9_i32_77 : i32
    %c5_i32_78 = arith.constant 5 : i32
    %128 = arith.addi %127, %c5_i32_78 : i32
    %129 = arith.index_cast %128 : i32 to index
    %130 = memref.load %arg3[%129] : memref<72xf32, #tpu.memory_space<smem>>
    %131 = vector.broadcast %130 : f32 to vector<16x16xf32>
    %132 = arith.mulf %115, %131 : vector<16x16xf32>
    %133 = arith.addf %113, %132 : vector<16x16xf32>
    %c0_79 = arith.constant 0 : index
    %c2_80 = arith.constant 2 : index
    %c0_81 = arith.constant 0 : index
    %134 = vector.load %arg6[%c0_79, %c2_80, %c0_81] : memref<4x18x18xf32, #tpu.memory_space<vmem>>, vector<1x16x16xf32>
    %135 = vector.shape_cast %134 : vector<1x16x16xf32> to vector<16x16xf32>
    %c0_i32_82 = arith.constant 0 : i32
    %136 = arith.addi %0, %c0_i32_82 : i32
    %c0_i32_83 = arith.constant 0 : i32
    %137 = arith.addi %136, %c0_i32_83 : i32
    %c9_i32_84 = arith.constant 9 : i32
    %138 = arith.muli %137, %c9_i32_84 : i32
    %c6_i32 = arith.constant 6 : i32
    %139 = arith.addi %138, %c6_i32 : i32
    %140 = arith.index_cast %139 : i32 to index
    %141 = memref.load %arg3[%140] : memref<72xf32, #tpu.memory_space<smem>>
    %142 = vector.broadcast %141 : f32 to vector<16x16xf32>
    %143 = arith.mulf %135, %142 : vector<16x16xf32>
    %144 = arith.addf %124, %143 : vector<16x16xf32>
    %c0_i32_85 = arith.constant 0 : i32
    %145 = arith.addi %0, %c0_i32_85 : i32
    %c1_i32_86 = arith.constant 1 : i32
    %146 = arith.addi %145, %c1_i32_86 : i32
    %c9_i32_87 = arith.constant 9 : i32
    %147 = arith.muli %146, %c9_i32_87 : i32
    %c6_i32_88 = arith.constant 6 : i32
    %148 = arith.addi %147, %c6_i32_88 : i32
    %149 = arith.index_cast %148 : i32 to index
    %150 = memref.load %arg3[%149] : memref<72xf32, #tpu.memory_space<smem>>
    %151 = vector.broadcast %150 : f32 to vector<16x16xf32>
    %152 = arith.mulf %135, %151 : vector<16x16xf32>
    %153 = arith.addf %133, %152 : vector<16x16xf32>
    %c0_89 = arith.constant 0 : index
    %c2_90 = arith.constant 2 : index
    %c1_91 = arith.constant 1 : index
    %154 = vector.load %arg6[%c0_89, %c2_90, %c1_91] : memref<4x18x18xf32, #tpu.memory_space<vmem>>, vector<1x16x16xf32>
    %155 = vector.shape_cast %154 : vector<1x16x16xf32> to vector<16x16xf32>
    %c0_i32_92 = arith.constant 0 : i32
    %156 = arith.addi %0, %c0_i32_92 : i32
    %c0_i32_93 = arith.constant 0 : i32
    %157 = arith.addi %156, %c0_i32_93 : i32
    %c9_i32_94 = arith.constant 9 : i32
    %158 = arith.muli %157, %c9_i32_94 : i32
    %c7_i32 = arith.constant 7 : i32
    %159 = arith.addi %158, %c7_i32 : i32
    %160 = arith.index_cast %159 : i32 to index
    %161 = memref.load %arg3[%160] : memref<72xf32, #tpu.memory_space<smem>>
    %162 = vector.broadcast %161 : f32 to vector<16x16xf32>
    %163 = arith.mulf %155, %162 : vector<16x16xf32>
    %164 = arith.addf %144, %163 : vector<16x16xf32>
    %c0_i32_95 = arith.constant 0 : i32
    %165 = arith.addi %0, %c0_i32_95 : i32
    %c1_i32_96 = arith.constant 1 : i32
    %166 = arith.addi %165, %c1_i32_96 : i32
    %c9_i32_97 = arith.constant 9 : i32
    %167 = arith.muli %166, %c9_i32_97 : i32
    %c7_i32_98 = arith.constant 7 : i32
    %168 = arith.addi %167, %c7_i32_98 : i32
    %169 = arith.index_cast %168 : i32 to index
    %170 = memref.load %arg3[%169] : memref<72xf32, #tpu.memory_space<smem>>
    %171 = vector.broadcast %170 : f32 to vector<16x16xf32>
    %172 = arith.mulf %155, %171 : vector<16x16xf32>
    %173 = arith.addf %153, %172 : vector<16x16xf32>
    %c0_99 = arith.constant 0 : index
    %c2_100 = arith.constant 2 : index
    %c2_101 = arith.constant 2 : index
    %174 = vector.load %arg6[%c0_99, %c2_100, %c2_101] : memref<4x18x18xf32, #tpu.memory_space<vmem>>, vector<1x16x16xf32>
    %175 = vector.shape_cast %174 : vector<1x16x16xf32> to vector<16x16xf32>
    %c0_i32_102 = arith.constant 0 : i32
    %176 = arith.addi %0, %c0_i32_102 : i32
    %c0_i32_103 = arith.constant 0 : i32
    %177 = arith.addi %176, %c0_i32_103 : i32
    %c9_i32_104 = arith.constant 9 : i32
    %178 = arith.muli %177, %c9_i32_104 : i32
    %c8_i32_105 = arith.constant 8 : i32
    %179 = arith.addi %178, %c8_i32_105 : i32
    %180 = arith.index_cast %179 : i32 to index
    %181 = memref.load %arg3[%180] : memref<72xf32, #tpu.memory_space<smem>>
    %182 = vector.broadcast %181 : f32 to vector<16x16xf32>
    %183 = arith.mulf %175, %182 : vector<16x16xf32>
    %184 = arith.addf %164, %183 : vector<16x16xf32>
    %c0_i32_106 = arith.constant 0 : i32
    %185 = arith.addi %0, %c0_i32_106 : i32
    %c1_i32_107 = arith.constant 1 : i32
    %186 = arith.addi %185, %c1_i32_107 : i32
    %c9_i32_108 = arith.constant 9 : i32
    %187 = arith.muli %186, %c9_i32_108 : i32
    %c8_i32_109 = arith.constant 8 : i32
    %188 = arith.addi %187, %c8_i32_109 : i32
    %189 = arith.index_cast %188 : i32 to index
    %190 = memref.load %arg3[%189] : memref<72xf32, #tpu.memory_space<smem>>
    %191 = vector.broadcast %190 : f32 to vector<16x16xf32>
    %192 = arith.mulf %175, %191 : vector<16x16xf32>
    %193 = arith.addf %173, %192 : vector<16x16xf32>
    %c0_i32_110 = arith.constant 0 : i32
    %194 = arith.addi %0, %c0_i32_110 : i32
    %c0_i32_111 = arith.constant 0 : i32
    %195 = arith.addi %194, %c0_i32_111 : i32
    %196 = arith.index_cast %195 : i32 to index
    %197 = memref.load %arg4[%196] : memref<8xf32, #tpu.memory_space<smem>>
    %198 = vector.broadcast %197 : f32 to vector<16x16xf32>
    %199 = arith.addf %184, %198 : vector<16x16xf32>
    %cst_112 = arith.constant 0.000000e+00 : f32
    %200 = vector.broadcast %cst_112 : f32 to vector<16x16xf32>
    %201 = arith.cmpf oge, %199, %200 : vector<16x16xf32>
    %cst_113 = arith.constant 0.00999999977 : f32
    %202 = vector.broadcast %cst_113 : f32 to vector<16x16xf32>
    %203 = arith.mulf %202, %199 : vector<16x16xf32>
    %204 = arith.select %201, %199, %203 : vector<16x16xi1>, vector<16x16xf32>
    %c0_114 = arith.constant 0 : index
    %c0_115 = arith.constant 0 : index
    %c0_116 = arith.constant 0 : index
    %c0_117 = arith.constant 0 : index
    %205 = vector.load %arg5[%c0_114, %c0_115, %c0_116, %c0_117] : memref<1x8x16x16xf32, #tpu.memory_space<vmem>>, vector<1x1x16x16xf32>
    %206 = vector.shape_cast %205 : vector<1x1x16x16xf32> to vector<16x16xf32>
    %207 = vector.shape_cast %204 : vector<16x16xf32> to vector<1x1x16x16xf32>
    tpu.vector_store %arg5[%c0_114, %c0_115, %c0_116, %c0_117], %207 {strides = array<i32>} : memref<1x8x16x16xf32, #tpu.memory_space<vmem>>, vector<1x1x16x16xf32>,
    %c0_i32_118 = arith.constant 0 : i32
    %208 = arith.addi %0, %c0_i32_118 : i32
    %c1_i32_119 = arith.constant 1 : i32
    %209 = arith.addi %208, %c1_i32_119 : i32
    %210 = arith.index_cast %209 : i32 to index
    %211 = memref.load %arg4[%210] : memref<8xf32, #tpu.memory_space<smem>>
    %212 = vector.broadcast %211 : f32 to vector<16x16xf32>
    %213 = arith.addf %193, %212 : vector<16x16xf32>
    %cst_120 = arith.constant 0.000000e+00 : f32
    %214 = vector.broadcast %cst_120 : f32 to vector<16x16xf32>
    %215 = arith.cmpf oge, %213, %214 : vector<16x16xf32>
    %cst_121 = arith.constant 0.00999999977 : f32
    %216 = vector.broadcast %cst_121 : f32 to vector<16x16xf32>
    %217 = arith.mulf %216, %213 : vector<16x16xf32>
    %218 = arith.select %215, %213, %217 : vector<16x16xi1>, vector<16x16xf32>
    %c0_122 = arith.constant 0 : index
    %c1_123 = arith.constant 1 : index
    %c0_124 = arith.constant 0 : index
    %c0_125 = arith.constant 0 : index
    %219 = vector.load %arg5[%c0_122, %c1_123, %c0_124, %c0_125] : memref<1x8x16x16xf32, #tpu.memory_space<vmem>>, vector<1x1x16x16xf32>
    %220 = vector.shape_cast %219 : vector<1x1x16x16xf32> to vector<16x16xf32>
    %221 = vector.shape_cast %218 : vector<16x16xf32> to vector<1x1x16x16xf32>
    tpu.vector_store %arg5[%c0_122, %c1_123, %c0_124, %c0_125], %221 {strides = array<i32>} : memref<1x8x16x16xf32, #tpu.memory_space<vmem>>, vector<1x1x16x16xf32>,
    %cst_126 = arith.constant 0.000000e+00 : f32
    %222 = vector.broadcast %cst_126 : f32 to vector<16x16xf32>
    %cst_127 = arith.constant 0.000000e+00 : f32
    %223 = vector.broadcast %cst_127 : f32 to vector<16x16xf32>
    %c1_128 = arith.constant 1 : index
    %c0_129 = arith.constant 0 : index
    %c0_130 = arith.constant 0 : index
    %224 = vector.load %arg6[%c1_128, %c0_129, %c0_130] : memref<4x18x18xf32, #tpu.memory_space<vmem>>, vector<1x16x16xf32>
    %225 = vector.shape_cast %224 : vector<1x16x16xf32> to vector<16x16xf32>
    %c2_i32_131 = arith.constant 2 : i32
    %226 = arith.addi %0, %c2_i32_131 : i32
    %c0_i32_132 = arith.constant 0 : i32
    %227 = arith.addi %226, %c0_i32_132 : i32
    %c9_i32_133 = arith.constant 9 : i32
    %228 = arith.muli %227, %c9_i32_133 : i32
    %c0_i32_134 = arith.constant 0 : i32
    %229 = arith.addi %228, %c0_i32_134 : i32
    %230 = arith.index_cast %229 : i32 to index
    %231 = memref.load %arg3[%230] : memref<72xf32, #tpu.memory_space<smem>>
    %232 = vector.broadcast %231 : f32 to vector<16x16xf32>
    %233 = arith.mulf %225, %232 : vector<16x16xf32>
    %234 = arith.addf %222, %233 : vector<16x16xf32>
    %c2_i32_135 = arith.constant 2 : i32
    %235 = arith.addi %0, %c2_i32_135 : i32
    %c1_i32_136 = arith.constant 1 : i32
    %236 = arith.addi %235, %c1_i32_136 : i32
    %c9_i32_137 = arith.constant 9 : i32
    %237 = arith.muli %236, %c9_i32_137 : i32
    %c0_i32_138 = arith.constant 0 : i32
    %238 = arith.addi %237, %c0_i32_138 : i32
    %239 = arith.index_cast %238 : i32 to index
    %240 = memref.load %arg3[%239] : memref<72xf32, #tpu.memory_space<smem>>
    %241 = vector.broadcast %240 : f32 to vector<16x16xf32>
    %242 = arith.mulf %225, %241 : vector<16x16xf32>
    %243 = arith.addf %223, %242 : vector<16x16xf32>
    %c1_139 = arith.constant 1 : index
    %c0_140 = arith.constant 0 : index
    %c1_141 = arith.constant 1 : index
    %244 = vector.load %arg6[%c1_139, %c0_140, %c1_141] : memref<4x18x18xf32, #tpu.memory_space<vmem>>, vector<1x16x16xf32>
    %245 = vector.shape_cast %244 : vector<1x16x16xf32> to vector<16x16xf32>
    %c2_i32_142 = arith.constant 2 : i32
    %246 = arith.addi %0, %c2_i32_142 : i32
    %c0_i32_143 = arith.constant 0 : i32
    %247 = arith.addi %246, %c0_i32_143 : i32
    %c9_i32_144 = arith.constant 9 : i32
    %248 = arith.muli %247, %c9_i32_144 : i32
    %c1_i32_145 = arith.constant 1 : i32
    %249 = arith.addi %248, %c1_i32_145 : i32
    %250 = arith.index_cast %249 : i32 to index
    %251 = memref.load %arg3[%250] : memref<72xf32, #tpu.memory_space<smem>>
    %252 = vector.broadcast %251 : f32 to vector<16x16xf32>
    %253 = arith.mulf %245, %252 : vector<16x16xf32>
    %254 = arith.addf %234, %253 : vector<16x16xf32>
    %c2_i32_146 = arith.constant 2 : i32
    %255 = arith.addi %0, %c2_i32_146 : i32
    %c1_i32_147 = arith.constant 1 : i32
    %256 = arith.addi %255, %c1_i32_147 : i32
    %c9_i32_148 = arith.constant 9 : i32
    %257 = arith.muli %256, %c9_i32_148 : i32
    %c1_i32_149 = arith.constant 1 : i32
    %258 = arith.addi %257, %c1_i32_149 : i32
    %259 = arith.index_cast %258 : i32 to index
    %260 = memref.load %arg3[%259] : memref<72xf32, #tpu.memory_space<smem>>
    %261 = vector.broadcast %260 : f32 to vector<16x16xf32>
    %262 = arith.mulf %245, %261 : vector<16x16xf32>
    %263 = arith.addf %243, %262 : vector<16x16xf32>
    %c1_150 = arith.constant 1 : index
    %c0_151 = arith.constant 0 : index
    %c2_152 = arith.constant 2 : index
    %264 = vector.load %arg6[%c1_150, %c0_151, %c2_152] : memref<4x18x18xf32, #tpu.memory_space<vmem>>, vector<1x16x16xf32>
    %265 = vector.shape_cast %264 : vector<1x16x16xf32> to vector<16x16xf32>
    %c2_i32_153 = arith.constant 2 : i32
    %266 = arith.addi %0, %c2_i32_153 : i32
    %c0_i32_154 = arith.constant 0 : i32
    %267 = arith.addi %266, %c0_i32_154 : i32
    %c9_i32_155 = arith.constant 9 : i32
    %268 = arith.muli %267, %c9_i32_155 : i32
    %c2_i32_156 = arith.constant 2 : i32
    %269 = arith.addi %268, %c2_i32_156 : i32
    %270 = arith.index_cast %269 : i32 to index
    %271 = memref.load %arg3[%270] : memref<72xf32, #tpu.memory_space<smem>>
    %272 = vector.broadcast %271 : f32 to vector<16x16xf32>
    %273 = arith.mulf %265, %272 : vector<16x16xf32>
    %274 = arith.addf %254, %273 : vector<16x16xf32>
    %c2_i32_157 = arith.constant 2 : i32
    %275 = arith.addi %0, %c2_i32_157 : i32
    %c1_i32_158 = arith.constant 1 : i32
    %276 = arith.addi %275, %c1_i32_158 : i32
    %c9_i32_159 = arith.constant 9 : i32
    %277 = arith.muli %276, %c9_i32_159 : i32
    %c2_i32_160 = arith.constant 2 : i32
    %278 = arith.addi %277, %c2_i32_160 : i32
    %279 = arith.index_cast %278 : i32 to index
    %280 = memref.load %arg3[%279] : memref<72xf32, #tpu.memory_space<smem>>
    %281 = vector.broadcast %280 : f32 to vector<16x16xf32>
    %282 = arith.mulf %265, %281 : vector<16x16xf32>
    %283 = arith.addf %263, %282 : vector<16x16xf32>
    %c1_161 = arith.constant 1 : index
    %c1_162 = arith.constant 1 : index
    %c0_163 = arith.constant 0 : index
    %284 = vector.load %arg6[%c1_161, %c1_162, %c0_163] : memref<4x18x18xf32, #tpu.memory_space<vmem>>, vector<1x16x16xf32>
    %285 = vector.shape_cast %284 : vector<1x16x16xf32> to vector<16x16xf32>
    %c2_i32_164 = arith.constant 2 : i32
    %286 = arith.addi %0, %c2_i32_164 : i32
    %c0_i32_165 = arith.constant 0 : i32
    %287 = arith.addi %286, %c0_i32_165 : i32
    %c9_i32_166 = arith.constant 9 : i32
    %288 = arith.muli %287, %c9_i32_166 : i32
    %c3_i32_167 = arith.constant 3 : i32
    %289 = arith.addi %288, %c3_i32_167 : i32
    %290 = arith.index_cast %289 : i32 to index
    %291 = memref.load %arg3[%290] : memref<72xf32, #tpu.memory_space<smem>>
    %292 = vector.broadcast %291 : f32 to vector<16x16xf32>
    %293 = arith.mulf %285, %292 : vector<16x16xf32>
    %294 = arith.addf %274, %293 : vector<16x16xf32>
    %c2_i32_168 = arith.constant 2 : i32
    %295 = arith.addi %0, %c2_i32_168 : i32
    %c1_i32_169 = arith.constant 1 : i32
    %296 = arith.addi %295, %c1_i32_169 : i32
    %c9_i32_170 = arith.constant 9 : i32
    %297 = arith.muli %296, %c9_i32_170 : i32
    %c3_i32_171 = arith.constant 3 : i32
    %298 = arith.addi %297, %c3_i32_171 : i32
    %299 = arith.index_cast %298 : i32 to index
    %300 = memref.load %arg3[%299] : memref<72xf32, #tpu.memory_space<smem>>
    %301 = vector.broadcast %300 : f32 to vector<16x16xf32>
    %302 = arith.mulf %285, %301 : vector<16x16xf32>
    %303 = arith.addf %283, %302 : vector<16x16xf32>
    %c1_172 = arith.constant 1 : index
    %c1_173 = arith.constant 1 : index
    %c1_174 = arith.constant 1 : index
    %304 = vector.load %arg6[%c1_172, %c1_173, %c1_174] : memref<4x18x18xf32, #tpu.memory_space<vmem>>, vector<1x16x16xf32>
    %305 = vector.shape_cast %304 : vector<1x16x16xf32> to vector<16x16xf32>
    %c2_i32_175 = arith.constant 2 : i32
    %306 = arith.addi %0, %c2_i32_175 : i32
    %c0_i32_176 = arith.constant 0 : i32
    %307 = arith.addi %306, %c0_i32_176 : i32
    %c9_i32_177 = arith.constant 9 : i32
    %308 = arith.muli %307, %c9_i32_177 : i32
    %c4_i32_178 = arith.constant 4 : i32
    %309 = arith.addi %308, %c4_i32_178 : i32
    %310 = arith.index_cast %309 : i32 to index
    %311 = memref.load %arg3[%310] : memref<72xf32, #tpu.memory_space<smem>>
    %312 = vector.broadcast %311 : f32 to vector<16x16xf32>
    %313 = arith.mulf %305, %312 : vector<16x16xf32>
    %314 = arith.addf %294, %313 : vector<16x16xf32>
    %c2_i32_179 = arith.constant 2 : i32
    %315 = arith.addi %0, %c2_i32_179 : i32
    %c1_i32_180 = arith.constant 1 : i32
    %316 = arith.addi %315, %c1_i32_180 : i32
    %c9_i32_181 = arith.constant 9 : i32
    %317 = arith.muli %316, %c9_i32_181 : i32
    %c4_i32_182 = arith.constant 4 : i32
    %318 = arith.addi %317, %c4_i32_182 : i32
    %319 = arith.index_cast %318 : i32 to index
    %320 = memref.load %arg3[%319] : memref<72xf32, #tpu.memory_space<smem>>
    %321 = vector.broadcast %320 : f32 to vector<16x16xf32>
    %322 = arith.mulf %305, %321 : vector<16x16xf32>
    %323 = arith.addf %303, %322 : vector<16x16xf32>
    %c1_183 = arith.constant 1 : index
    %c1_184 = arith.constant 1 : index
    %c2_185 = arith.constant 2 : index
    %324 = vector.load %arg6[%c1_183, %c1_184, %c2_185] : memref<4x18x18xf32, #tpu.memory_space<vmem>>, vector<1x16x16xf32>
    %325 = vector.shape_cast %324 : vector<1x16x16xf32> to vector<16x16xf32>
    %c2_i32_186 = arith.constant 2 : i32
    %326 = arith.addi %0, %c2_i32_186 : i32
    %c0_i32_187 = arith.constant 0 : i32
    %327 = arith.addi %326, %c0_i32_187 : i32
    %c9_i32_188 = arith.constant 9 : i32
    %328 = arith.muli %327, %c9_i32_188 : i32
    %c5_i32_189 = arith.constant 5 : i32
    %329 = arith.addi %328, %c5_i32_189 : i32
    %330 = arith.index_cast %329 : i32 to index
    %331 = memref.load %arg3[%330] : memref<72xf32, #tpu.memory_space<smem>>
    %332 = vector.broadcast %331 : f32 to vector<16x16xf32>
    %333 = arith.mulf %325, %332 : vector<16x16xf32>
    %334 = arith.addf %314, %333 : vector<16x16xf32>
    %c2_i32_190 = arith.constant 2 : i32
    %335 = arith.addi %0, %c2_i32_190 : i32
    %c1_i32_191 = arith.constant 1 : i32
    %336 = arith.addi %335, %c1_i32_191 : i32
    %c9_i32_192 = arith.constant 9 : i32
    %337 = arith.muli %336, %c9_i32_192 : i32
    %c5_i32_193 = arith.constant 5 : i32
    %338 = arith.addi %337, %c5_i32_193 : i32
    %339 = arith.index_cast %338 : i32 to index
    %340 = memref.load %arg3[%339] : memref<72xf32, #tpu.memory_space<smem>>
    %341 = vector.broadcast %340 : f32 to vector<16x16xf32>
    %342 = arith.mulf %325, %341 : vector<16x16xf32>
    %343 = arith.addf %323, %342 : vector<16x16xf32>
    %c1_194 = arith.constant 1 : index
    %c2_195 = arith.constant 2 : index
    %c0_196 = arith.constant 0 : index
    %344 = vector.load %arg6[%c1_194, %c2_195, %c0_196] : memref<4x18x18xf32, #tpu.memory_space<vmem>>, vector<1x16x16xf32>
    %345 = vector.shape_cast %344 : vector<1x16x16xf32> to vector<16x16xf32>
    %c2_i32_197 = arith.constant 2 : i32
    %346 = arith.addi %0, %c2_i32_197 : i32
    %c0_i32_198 = arith.constant 0 : i32
    %347 = arith.addi %346, %c0_i32_198 : i32
    %c9_i32_199 = arith.constant 9 : i32
    %348 = arith.muli %347, %c9_i32_199 : i32
    %c6_i32_200 = arith.constant 6 : i32
    %349 = arith.addi %348, %c6_i32_200 : i32
    %350 = arith.index_cast %349 : i32 to index
    %351 = memref.load %arg3[%350] : memref<72xf32, #tpu.memory_space<smem>>
    %352 = vector.broadcast %351 : f32 to vector<16x16xf32>
    %353 = arith.mulf %345, %352 : vector<16x16xf32>
    %354 = arith.addf %334, %353 : vector<16x16xf32>
    %c2_i32_201 = arith.constant 2 : i32
    %355 = arith.addi %0, %c2_i32_201 : i32
    %c1_i32_202 = arith.constant 1 : i32
    %356 = arith.addi %355, %c1_i32_202 : i32
    %c9_i32_203 = arith.constant 9 : i32
    %357 = arith.muli %356, %c9_i32_203 : i32
    %c6_i32_204 = arith.constant 6 : i32
    %358 = arith.addi %357, %c6_i32_204 : i32
    %359 = arith.index_cast %358 : i32 to index
    %360 = memref.load %arg3[%359] : memref<72xf32, #tpu.memory_space<smem>>
    %361 = vector.broadcast %360 : f32 to vector<16x16xf32>
    %362 = arith.mulf %345, %361 : vector<16x16xf32>
    %363 = arith.addf %343, %362 : vector<16x16xf32>
    %c1_205 = arith.constant 1 : index
    %c2_206 = arith.constant 2 : index
    %c1_207 = arith.constant 1 : index
    %364 = vector.load %arg6[%c1_205, %c2_206, %c1_207] : memref<4x18x18xf32, #tpu.memory_space<vmem>>, vector<1x16x16xf32>
    %365 = vector.shape_cast %364 : vector<1x16x16xf32> to vector<16x16xf32>
    %c2_i32_208 = arith.constant 2 : i32
    %366 = arith.addi %0, %c2_i32_208 : i32
    %c0_i32_209 = arith.constant 0 : i32
    %367 = arith.addi %366, %c0_i32_209 : i32
    %c9_i32_210 = arith.constant 9 : i32
    %368 = arith.muli %367, %c9_i32_210 : i32
    %c7_i32_211 = arith.constant 7 : i32
    %369 = arith.addi %368, %c7_i32_211 : i32
    %370 = arith.index_cast %369 : i32 to index
    %371 = memref.load %arg3[%370] : memref<72xf32, #tpu.memory_space<smem>>
    %372 = vector.broadcast %371 : f32 to vector<16x16xf32>
    %373 = arith.mulf %365, %372 : vector<16x16xf32>
    %374 = arith.addf %354, %373 : vector<16x16xf32>
    %c2_i32_212 = arith.constant 2 : i32
    %375 = arith.addi %0, %c2_i32_212 : i32
    %c1_i32_213 = arith.constant 1 : i32
    %376 = arith.addi %375, %c1_i32_213 : i32
    %c9_i32_214 = arith.constant 9 : i32
    %377 = arith.muli %376, %c9_i32_214 : i32
    %c7_i32_215 = arith.constant 7 : i32
    %378 = arith.addi %377, %c7_i32_215 : i32
    %379 = arith.index_cast %378 : i32 to index
    %380 = memref.load %arg3[%379] : memref<72xf32, #tpu.memory_space<smem>>
    %381 = vector.broadcast %380 : f32 to vector<16x16xf32>
    %382 = arith.mulf %365, %381 : vector<16x16xf32>
    %383 = arith.addf %363, %382 : vector<16x16xf32>
    %c1_216 = arith.constant 1 : index
    %c2_217 = arith.constant 2 : index
    %c2_218 = arith.constant 2 : index
    %384 = vector.load %arg6[%c1_216, %c2_217, %c2_218] : memref<4x18x18xf32, #tpu.memory_space<vmem>>, vector<1x16x16xf32>
    %385 = vector.shape_cast %384 : vector<1x16x16xf32> to vector<16x16xf32>
    %c2_i32_219 = arith.constant 2 : i32
    %386 = arith.addi %0, %c2_i32_219 : i32
    %c0_i32_220 = arith.constant 0 : i32
    %387 = arith.addi %386, %c0_i32_220 : i32
    %c9_i32_221 = arith.constant 9 : i32
    %388 = arith.muli %387, %c9_i32_221 : i32
    %c8_i32_222 = arith.constant 8 : i32
    %389 = arith.addi %388, %c8_i32_222 : i32
    %390 = arith.index_cast %389 : i32 to index
    %391 = memref.load %arg3[%390] : memref<72xf32, #tpu.memory_space<smem>>
    %392 = vector.broadcast %391 : f32 to vector<16x16xf32>
    %393 = arith.mulf %385, %392 : vector<16x16xf32>
    %394 = arith.addf %374, %393 : vector<16x16xf32>
    %c2_i32_223 = arith.constant 2 : i32
    %395 = arith.addi %0, %c2_i32_223 : i32
    %c1_i32_224 = arith.constant 1 : i32
    %396 = arith.addi %395, %c1_i32_224 : i32
    %c9_i32_225 = arith.constant 9 : i32
    %397 = arith.muli %396, %c9_i32_225 : i32
    %c8_i32_226 = arith.constant 8 : i32
    %398 = arith.addi %397, %c8_i32_226 : i32
    %399 = arith.index_cast %398 : i32 to index
    %400 = memref.load %arg3[%399] : memref<72xf32, #tpu.memory_space<smem>>
    %401 = vector.broadcast %400 : f32 to vector<16x16xf32>
    %402 = arith.mulf %385, %401 : vector<16x16xf32>
    %403 = arith.addf %383, %402 : vector<16x16xf32>
    %c2_i32_227 = arith.constant 2 : i32
    %404 = arith.addi %0, %c2_i32_227 : i32
    %c0_i32_228 = arith.constant 0 : i32
    %405 = arith.addi %404, %c0_i32_228 : i32
    %406 = arith.index_cast %405 : i32 to index
    %407 = memref.load %arg4[%406] : memref<8xf32, #tpu.memory_space<smem>>
    %408 = vector.broadcast %407 : f32 to vector<16x16xf32>
    %409 = arith.addf %394, %408 : vector<16x16xf32>
    %cst_229 = arith.constant 0.000000e+00 : f32
    %410 = vector.broadcast %cst_229 : f32 to vector<16x16xf32>
    %411 = arith.cmpf oge, %409, %410 : vector<16x16xf32>
    %cst_230 = arith.constant 0.00999999977 : f32
    %412 = vector.broadcast %cst_230 : f32 to vector<16x16xf32>
    %413 = arith.mulf %412, %409 : vector<16x16xf32>
    %414 = arith.select %411, %409, %413 : vector<16x16xi1>, vector<16x16xf32>
    %c0_231 = arith.constant 0 : index
    %c2_232 = arith.constant 2 : index
    %c0_233 = arith.constant 0 : index
    %c0_234 = arith.constant 0 : index
    %415 = vector.load %arg5[%c0_231, %c2_232, %c0_233, %c0_234] : memref<1x8x16x16xf32, #tpu.memory_space<vmem>>, vector<1x1x16x16xf32>
    %416 = vector.shape_cast %415 : vector<1x1x16x16xf32> to vector<16x16xf32>
    %417 = vector.shape_cast %414 : vector<16x16xf32> to vector<1x1x16x16xf32>
    tpu.vector_store %arg5[%c0_231, %c2_232, %c0_233, %c0_234], %417 {strides = array<i32>} : memref<1x8x16x16xf32, #tpu.memory_space<vmem>>, vector<1x1x16x16xf32>,
    %c2_i32_235 = arith.constant 2 : i32
    %418 = arith.addi %0, %c2_i32_235 : i32
    %c1_i32_236 = arith.constant 1 : i32
    %419 = arith.addi %418, %c1_i32_236 : i32
    %420 = arith.index_cast %419 : i32 to index
    %421 = memref.load %arg4[%420] : memref<8xf32, #tpu.memory_space<smem>>
    %422 = vector.broadcast %421 : f32 to vector<16x16xf32>
    %423 = arith.addf %403, %422 : vector<16x16xf32>
    %cst_237 = arith.constant 0.000000e+00 : f32
    %424 = vector.broadcast %cst_237 : f32 to vector<16x16xf32>
    %425 = arith.cmpf oge, %423, %424 : vector<16x16xf32>
    %cst_238 = arith.constant 0.00999999977 : f32
    %426 = vector.broadcast %cst_238 : f32 to vector<16x16xf32>
    %427 = arith.mulf %426, %423 : vector<16x16xf32>
    %428 = arith.select %425, %423, %427 : vector<16x16xi1>, vector<16x16xf32>
    %c0_239 = arith.constant 0 : index
    %c3 = arith.constant 3 : index
    %c0_240 = arith.constant 0 : index
    %c0_241 = arith.constant 0 : index
    %429 = vector.load %arg5[%c0_239, %c3, %c0_240, %c0_241] : memref<1x8x16x16xf32, #tpu.memory_space<vmem>>, vector<1x1x16x16xf32>
    %430 = vector.shape_cast %429 : vector<1x1x16x16xf32> to vector<16x16xf32>
    %431 = vector.shape_cast %428 : vector<16x16xf32> to vector<1x1x16x16xf32>
    tpu.vector_store %arg5[%c0_239, %c3, %c0_240, %c0_241], %431 {strides = array<i32>} : memref<1x8x16x16xf32, #tpu.memory_space<vmem>>, vector<1x1x16x16xf32>,
    %cst_242 = arith.constant 0.000000e+00 : f32
    %432 = vector.broadcast %cst_242 : f32 to vector<16x16xf32>
    %cst_243 = arith.constant 0.000000e+00 : f32
    %433 = vector.broadcast %cst_243 : f32 to vector<16x16xf32>
    %c2_244 = arith.constant 2 : index
    %c0_245 = arith.constant 0 : index
    %c0_246 = arith.constant 0 : index
    %434 = vector.load %arg6[%c2_244, %c0_245, %c0_246] : memref<4x18x18xf32, #tpu.memory_space<vmem>>, vector<1x16x16xf32>
    %435 = vector.shape_cast %434 : vector<1x16x16xf32> to vector<16x16xf32>
    %c4_i32_247 = arith.constant 4 : i32
    %436 = arith.addi %0, %c4_i32_247 : i32
    %c0_i32_248 = arith.constant 0 : i32
    %437 = arith.addi %436, %c0_i32_248 : i32
    %c9_i32_249 = arith.constant 9 : i32
    %438 = arith.muli %437, %c9_i32_249 : i32
    %c0_i32_250 = arith.constant 0 : i32
    %439 = arith.addi %438, %c0_i32_250 : i32
    %440 = arith.index_cast %439 : i32 to index
    %441 = memref.load %arg3[%440] : memref<72xf32, #tpu.memory_space<smem>>
    %442 = vector.broadcast %441 : f32 to vector<16x16xf32>
    %443 = arith.mulf %435, %442 : vector<16x16xf32>
    %444 = arith.addf %432, %443 : vector<16x16xf32>
    %c4_i32_251 = arith.constant 4 : i32
    %445 = arith.addi %0, %c4_i32_251 : i32
    %c1_i32_252 = arith.constant 1 : i32
    %446 = arith.addi %445, %c1_i32_252 : i32
    %c9_i32_253 = arith.constant 9 : i32
    %447 = arith.muli %446, %c9_i32_253 : i32
    %c0_i32_254 = arith.constant 0 : i32
    %448 = arith.addi %447, %c0_i32_254 : i32
    %449 = arith.index_cast %448 : i32 to index
    %450 = memref.load %arg3[%449] : memref<72xf32, #tpu.memory_space<smem>>
    %451 = vector.broadcast %450 : f32 to vector<16x16xf32>
    %452 = arith.mulf %435, %451 : vector<16x16xf32>
    %453 = arith.addf %433, %452 : vector<16x16xf32>
    %c2_255 = arith.constant 2 : index
    %c0_256 = arith.constant 0 : index
    %c1_257 = arith.constant 1 : index
    %454 = vector.load %arg6[%c2_255, %c0_256, %c1_257] : memref<4x18x18xf32, #tpu.memory_space<vmem>>, vector<1x16x16xf32>
    %455 = vector.shape_cast %454 : vector<1x16x16xf32> to vector<16x16xf32>
    %c4_i32_258 = arith.constant 4 : i32
    %456 = arith.addi %0, %c4_i32_258 : i32
    %c0_i32_259 = arith.constant 0 : i32
    %457 = arith.addi %456, %c0_i32_259 : i32
    %c9_i32_260 = arith.constant 9 : i32
    %458 = arith.muli %457, %c9_i32_260 : i32
    %c1_i32_261 = arith.constant 1 : i32
    %459 = arith.addi %458, %c1_i32_261 : i32
    %460 = arith.index_cast %459 : i32 to index
    %461 = memref.load %arg3[%460] : memref<72xf32, #tpu.memory_space<smem>>
    %462 = vector.broadcast %461 : f32 to vector<16x16xf32>
    %463 = arith.mulf %455, %462 : vector<16x16xf32>
    %464 = arith.addf %444, %463 : vector<16x16xf32>
    %c4_i32_262 = arith.constant 4 : i32
    %465 = arith.addi %0, %c4_i32_262 : i32
    %c1_i32_263 = arith.constant 1 : i32
    %466 = arith.addi %465, %c1_i32_263 : i32
    %c9_i32_264 = arith.constant 9 : i32
    %467 = arith.muli %466, %c9_i32_264 : i32
    %c1_i32_265 = arith.constant 1 : i32
    %468 = arith.addi %467, %c1_i32_265 : i32
    %469 = arith.index_cast %468 : i32 to index
    %470 = memref.load %arg3[%469] : memref<72xf32, #tpu.memory_space<smem>>
    %471 = vector.broadcast %470 : f32 to vector<16x16xf32>
    %472 = arith.mulf %455, %471 : vector<16x16xf32>
    %473 = arith.addf %453, %472 : vector<16x16xf32>
    %c2_266 = arith.constant 2 : index
    %c0_267 = arith.constant 0 : index
    %c2_268 = arith.constant 2 : index
    %474 = vector.load %arg6[%c2_266, %c0_267, %c2_268] : memref<4x18x18xf32, #tpu.memory_space<vmem>>, vector<1x16x16xf32>
    %475 = vector.shape_cast %474 : vector<1x16x16xf32> to vector<16x16xf32>
    %c4_i32_269 = arith.constant 4 : i32
    %476 = arith.addi %0, %c4_i32_269 : i32
    %c0_i32_270 = arith.constant 0 : i32
    %477 = arith.addi %476, %c0_i32_270 : i32
    %c9_i32_271 = arith.constant 9 : i32
    %478 = arith.muli %477, %c9_i32_271 : i32
    %c2_i32_272 = arith.constant 2 : i32
    %479 = arith.addi %478, %c2_i32_272 : i32
    %480 = arith.index_cast %479 : i32 to index
    %481 = memref.load %arg3[%480] : memref<72xf32, #tpu.memory_space<smem>>
    %482 = vector.broadcast %481 : f32 to vector<16x16xf32>
    %483 = arith.mulf %475, %482 : vector<16x16xf32>
    %484 = arith.addf %464, %483 : vector<16x16xf32>
    %c4_i32_273 = arith.constant 4 : i32
    %485 = arith.addi %0, %c4_i32_273 : i32
    %c1_i32_274 = arith.constant 1 : i32
    %486 = arith.addi %485, %c1_i32_274 : i32
    %c9_i32_275 = arith.constant 9 : i32
    %487 = arith.muli %486, %c9_i32_275 : i32
    %c2_i32_276 = arith.constant 2 : i32
    %488 = arith.addi %487, %c2_i32_276 : i32
    %489 = arith.index_cast %488 : i32 to index
    %490 = memref.load %arg3[%489] : memref<72xf32, #tpu.memory_space<smem>>
    %491 = vector.broadcast %490 : f32 to vector<16x16xf32>
    %492 = arith.mulf %475, %491 : vector<16x16xf32>
    %493 = arith.addf %473, %492 : vector<16x16xf32>
    %c2_277 = arith.constant 2 : index
    %c1_278 = arith.constant 1 : index
    %c0_279 = arith.constant 0 : index
    %494 = vector.load %arg6[%c2_277, %c1_278, %c0_279] : memref<4x18x18xf32, #tpu.memory_space<vmem>>, vector<1x16x16xf32>
    %495 = vector.shape_cast %494 : vector<1x16x16xf32> to vector<16x16xf32>
    %c4_i32_280 = arith.constant 4 : i32
    %496 = arith.addi %0, %c4_i32_280 : i32
    %c0_i32_281 = arith.constant 0 : i32
    %497 = arith.addi %496, %c0_i32_281 : i32
    %c9_i32_282 = arith.constant 9 : i32
    %498 = arith.muli %497, %c9_i32_282 : i32
    %c3_i32_283 = arith.constant 3 : i32
    %499 = arith.addi %498, %c3_i32_283 : i32
    %500 = arith.index_cast %499 : i32 to index
    %501 = memref.load %arg3[%500] : memref<72xf32, #tpu.memory_space<smem>>
    %502 = vector.broadcast %501 : f32 to vector<16x16xf32>
    %503 = arith.mulf %495, %502 : vector<16x16xf32>
    %504 = arith.addf %484, %503 : vector<16x16xf32>
    %c4_i32_284 = arith.constant 4 : i32
    %505 = arith.addi %0, %c4_i32_284 : i32
    %c1_i32_285 = arith.constant 1 : i32
    %506 = arith.addi %505, %c1_i32_285 : i32
    %c9_i32_286 = arith.constant 9 : i32
    %507 = arith.muli %506, %c9_i32_286 : i32
    %c3_i32_287 = arith.constant 3 : i32
    %508 = arith.addi %507, %c3_i32_287 : i32
    %509 = arith.index_cast %508 : i32 to index
    %510 = memref.load %arg3[%509] : memref<72xf32, #tpu.memory_space<smem>>
    %511 = vector.broadcast %510 : f32 to vector<16x16xf32>
    %512 = arith.mulf %495, %511 : vector<16x16xf32>
    %513 = arith.addf %493, %512 : vector<16x16xf32>
    %c2_288 = arith.constant 2 : index
    %c1_289 = arith.constant 1 : index
    %c1_290 = arith.constant 1 : index
    %514 = vector.load %arg6[%c2_288, %c1_289, %c1_290] : memref<4x18x18xf32, #tpu.memory_space<vmem>>, vector<1x16x16xf32>
    %515 = vector.shape_cast %514 : vector<1x16x16xf32> to vector<16x16xf32>
    %c4_i32_291 = arith.constant 4 : i32
    %516 = arith.addi %0, %c4_i32_291 : i32
    %c0_i32_292 = arith.constant 0 : i32
    %517 = arith.addi %516, %c0_i32_292 : i32
    %c9_i32_293 = arith.constant 9 : i32
    %518 = arith.muli %517, %c9_i32_293 : i32
    %c4_i32_294 = arith.constant 4 : i32
    %519 = arith.addi %518, %c4_i32_294 : i32
    %520 = arith.index_cast %519 : i32 to index
    %521 = memref.load %arg3[%520] : memref<72xf32, #tpu.memory_space<smem>>
    %522 = vector.broadcast %521 : f32 to vector<16x16xf32>
    %523 = arith.mulf %515, %522 : vector<16x16xf32>
    %524 = arith.addf %504, %523 : vector<16x16xf32>
    %c4_i32_295 = arith.constant 4 : i32
    %525 = arith.addi %0, %c4_i32_295 : i32
    %c1_i32_296 = arith.constant 1 : i32
    %526 = arith.addi %525, %c1_i32_296 : i32
    %c9_i32_297 = arith.constant 9 : i32
    %527 = arith.muli %526, %c9_i32_297 : i32
    %c4_i32_298 = arith.constant 4 : i32
    %528 = arith.addi %527, %c4_i32_298 : i32
    %529 = arith.index_cast %528 : i32 to index
    %530 = memref.load %arg3[%529] : memref<72xf32, #tpu.memory_space<smem>>
    %531 = vector.broadcast %530 : f32 to vector<16x16xf32>
    %532 = arith.mulf %515, %531 : vector<16x16xf32>
    %533 = arith.addf %513, %532 : vector<16x16xf32>
    %c2_299 = arith.constant 2 : index
    %c1_300 = arith.constant 1 : index
    %c2_301 = arith.constant 2 : index
    %534 = vector.load %arg6[%c2_299, %c1_300, %c2_301] : memref<4x18x18xf32, #tpu.memory_space<vmem>>, vector<1x16x16xf32>
    %535 = vector.shape_cast %534 : vector<1x16x16xf32> to vector<16x16xf32>
    %c4_i32_302 = arith.constant 4 : i32
    %536 = arith.addi %0, %c4_i32_302 : i32
    %c0_i32_303 = arith.constant 0 : i32
    %537 = arith.addi %536, %c0_i32_303 : i32
    %c9_i32_304 = arith.constant 9 : i32
    %538 = arith.muli %537, %c9_i32_304 : i32
    %c5_i32_305 = arith.constant 5 : i32
    %539 = arith.addi %538, %c5_i32_305 : i32
    %540 = arith.index_cast %539 : i32 to index
    %541 = memref.load %arg3[%540] : memref<72xf32, #tpu.memory_space<smem>>
    %542 = vector.broadcast %541 : f32 to vector<16x16xf32>
    %543 = arith.mulf %535, %542 : vector<16x16xf32>
    %544 = arith.addf %524, %543 : vector<16x16xf32>
    %c4_i32_306 = arith.constant 4 : i32
    %545 = arith.addi %0, %c4_i32_306 : i32
    %c1_i32_307 = arith.constant 1 : i32
    %546 = arith.addi %545, %c1_i32_307 : i32
    %c9_i32_308 = arith.constant 9 : i32
    %547 = arith.muli %546, %c9_i32_308 : i32
    %c5_i32_309 = arith.constant 5 : i32
    %548 = arith.addi %547, %c5_i32_309 : i32
    %549 = arith.index_cast %548 : i32 to index
    %550 = memref.load %arg3[%549] : memref<72xf32, #tpu.memory_space<smem>>
    %551 = vector.broadcast %550 : f32 to vector<16x16xf32>
    %552 = arith.mulf %535, %551 : vector<16x16xf32>
    %553 = arith.addf %533, %552 : vector<16x16xf32>
    %c2_310 = arith.constant 2 : index
    %c2_311 = arith.constant 2 : index
    %c0_312 = arith.constant 0 : index
    %554 = vector.load %arg6[%c2_310, %c2_311, %c0_312] : memref<4x18x18xf32, #tpu.memory_space<vmem>>, vector<1x16x16xf32>
    %555 = vector.shape_cast %554 : vector<1x16x16xf32> to vector<16x16xf32>
    %c4_i32_313 = arith.constant 4 : i32
    %556 = arith.addi %0, %c4_i32_313 : i32
    %c0_i32_314 = arith.constant 0 : i32
    %557 = arith.addi %556, %c0_i32_314 : i32
    %c9_i32_315 = arith.constant 9 : i32
    %558 = arith.muli %557, %c9_i32_315 : i32
    %c6_i32_316 = arith.constant 6 : i32
    %559 = arith.addi %558, %c6_i32_316 : i32
    %560 = arith.index_cast %559 : i32 to index
    %561 = memref.load %arg3[%560] : memref<72xf32, #tpu.memory_space<smem>>
    %562 = vector.broadcast %561 : f32 to vector<16x16xf32>
    %563 = arith.mulf %555, %562 : vector<16x16xf32>
    %564 = arith.addf %544, %563 : vector<16x16xf32>
    %c4_i32_317 = arith.constant 4 : i32
    %565 = arith.addi %0, %c4_i32_317 : i32
    %c1_i32_318 = arith.constant 1 : i32
    %566 = arith.addi %565, %c1_i32_318 : i32
    %c9_i32_319 = arith.constant 9 : i32
    %567 = arith.muli %566, %c9_i32_319 : i32
    %c6_i32_320 = arith.constant 6 : i32
    %568 = arith.addi %567, %c6_i32_320 : i32
    %569 = arith.index_cast %568 : i32 to index
    %570 = memref.load %arg3[%569] : memref<72xf32, #tpu.memory_space<smem>>
    %571 = vector.broadcast %570 : f32 to vector<16x16xf32>
    %572 = arith.mulf %555, %571 : vector<16x16xf32>
    %573 = arith.addf %553, %572 : vector<16x16xf32>
    %c2_321 = arith.constant 2 : index
    %c2_322 = arith.constant 2 : index
    %c1_323 = arith.constant 1 : index
    %574 = vector.load %arg6[%c2_321, %c2_322, %c1_323] : memref<4x18x18xf32, #tpu.memory_space<vmem>>, vector<1x16x16xf32>
    %575 = vector.shape_cast %574 : vector<1x16x16xf32> to vector<16x16xf32>
    %c4_i32_324 = arith.constant 4 : i32
    %576 = arith.addi %0, %c4_i32_324 : i32
    %c0_i32_325 = arith.constant 0 : i32
    %577 = arith.addi %576, %c0_i32_325 : i32
    %c9_i32_326 = arith.constant 9 : i32
    %578 = arith.muli %577, %c9_i32_326 : i32
    %c7_i32_327 = arith.constant 7 : i32
    %579 = arith.addi %578, %c7_i32_327 : i32
    %580 = arith.index_cast %579 : i32 to index
    %581 = memref.load %arg3[%580] : memref<72xf32, #tpu.memory_space<smem>>
    %582 = vector.broadcast %581 : f32 to vector<16x16xf32>
    %583 = arith.mulf %575, %582 : vector<16x16xf32>
    %584 = arith.addf %564, %583 : vector<16x16xf32>
    %c4_i32_328 = arith.constant 4 : i32
    %585 = arith.addi %0, %c4_i32_328 : i32
    %c1_i32_329 = arith.constant 1 : i32
    %586 = arith.addi %585, %c1_i32_329 : i32
    %c9_i32_330 = arith.constant 9 : i32
    %587 = arith.muli %586, %c9_i32_330 : i32
    %c7_i32_331 = arith.constant 7 : i32
    %588 = arith.addi %587, %c7_i32_331 : i32
    %589 = arith.index_cast %588 : i32 to index
    %590 = memref.load %arg3[%589] : memref<72xf32, #tpu.memory_space<smem>>
    %591 = vector.broadcast %590 : f32 to vector<16x16xf32>
    %592 = arith.mulf %575, %591 : vector<16x16xf32>
    %593 = arith.addf %573, %592 : vector<16x16xf32>
    %c2_332 = arith.constant 2 : index
    %c2_333 = arith.constant 2 : index
    %c2_334 = arith.constant 2 : index
    %594 = vector.load %arg6[%c2_332, %c2_333, %c2_334] : memref<4x18x18xf32, #tpu.memory_space<vmem>>, vector<1x16x16xf32>
    %595 = vector.shape_cast %594 : vector<1x16x16xf32> to vector<16x16xf32>
    %c4_i32_335 = arith.constant 4 : i32
    %596 = arith.addi %0, %c4_i32_335 : i32
    %c0_i32_336 = arith.constant 0 : i32
    %597 = arith.addi %596, %c0_i32_336 : i32
    %c9_i32_337 = arith.constant 9 : i32
    %598 = arith.muli %597, %c9_i32_337 : i32
    %c8_i32_338 = arith.constant 8 : i32
    %599 = arith.addi %598, %c8_i32_338 : i32
    %600 = arith.index_cast %599 : i32 to index
    %601 = memref.load %arg3[%600] : memref<72xf32, #tpu.memory_space<smem>>
    %602 = vector.broadcast %601 : f32 to vector<16x16xf32>
    %603 = arith.mulf %595, %602 : vector<16x16xf32>
    %604 = arith.addf %584, %603 : vector<16x16xf32>
    %c4_i32_339 = arith.constant 4 : i32
    %605 = arith.addi %0, %c4_i32_339 : i32
    %c1_i32_340 = arith.constant 1 : i32
    %606 = arith.addi %605, %c1_i32_340 : i32
    %c9_i32_341 = arith.constant 9 : i32
    %607 = arith.muli %606, %c9_i32_341 : i32
    %c8_i32_342 = arith.constant 8 : i32
    %608 = arith.addi %607, %c8_i32_342 : i32
    %609 = arith.index_cast %608 : i32 to index
    %610 = memref.load %arg3[%609] : memref<72xf32, #tpu.memory_space<smem>>
    %611 = vector.broadcast %610 : f32 to vector<16x16xf32>
    %612 = arith.mulf %595, %611 : vector<16x16xf32>
    %613 = arith.addf %593, %612 : vector<16x16xf32>
    %c4_i32_343 = arith.constant 4 : i32
    %614 = arith.addi %0, %c4_i32_343 : i32
    %c0_i32_344 = arith.constant 0 : i32
    %615 = arith.addi %614, %c0_i32_344 : i32
    %616 = arith.index_cast %615 : i32 to index
    %617 = memref.load %arg4[%616] : memref<8xf32, #tpu.memory_space<smem>>
    %618 = vector.broadcast %617 : f32 to vector<16x16xf32>
    %619 = arith.addf %604, %618 : vector<16x16xf32>
    %cst_345 = arith.constant 0.000000e+00 : f32
    %620 = vector.broadcast %cst_345 : f32 to vector<16x16xf32>
    %621 = arith.cmpf oge, %619, %620 : vector<16x16xf32>
    %cst_346 = arith.constant 0.00999999977 : f32
    %622 = vector.broadcast %cst_346 : f32 to vector<16x16xf32>
    %623 = arith.mulf %622, %619 : vector<16x16xf32>
    %624 = arith.select %621, %619, %623 : vector<16x16xi1>, vector<16x16xf32>
    %c0_347 = arith.constant 0 : index
    %c4 = arith.constant 4 : index
    %c0_348 = arith.constant 0 : index
    %c0_349 = arith.constant 0 : index
    %625 = vector.load %arg5[%c0_347, %c4, %c0_348, %c0_349] : memref<1x8x16x16xf32, #tpu.memory_space<vmem>>, vector<1x1x16x16xf32>
    %626 = vector.shape_cast %625 : vector<1x1x16x16xf32> to vector<16x16xf32>
    %627 = vector.shape_cast %624 : vector<16x16xf32> to vector<1x1x16x16xf32>
    tpu.vector_store %arg5[%c0_347, %c4, %c0_348, %c0_349], %627 {strides = array<i32>} : memref<1x8x16x16xf32, #tpu.memory_space<vmem>>, vector<1x1x16x16xf32>,
    %c4_i32_350 = arith.constant 4 : i32
    %628 = arith.addi %0, %c4_i32_350 : i32
    %c1_i32_351 = arith.constant 1 : i32
    %629 = arith.addi %628, %c1_i32_351 : i32
    %630 = arith.index_cast %629 : i32 to index
    %631 = memref.load %arg4[%630] : memref<8xf32, #tpu.memory_space<smem>>
    %632 = vector.broadcast %631 : f32 to vector<16x16xf32>
    %633 = arith.addf %613, %632 : vector<16x16xf32>
    %cst_352 = arith.constant 0.000000e+00 : f32
    %634 = vector.broadcast %cst_352 : f32 to vector<16x16xf32>
    %635 = arith.cmpf oge, %633, %634 : vector<16x16xf32>
    %cst_353 = arith.constant 0.00999999977 : f32
    %636 = vector.broadcast %cst_353 : f32 to vector<16x16xf32>
    %637 = arith.mulf %636, %633 : vector<16x16xf32>
    %638 = arith.select %635, %633, %637 : vector<16x16xi1>, vector<16x16xf32>
    %c0_354 = arith.constant 0 : index
    %c5 = arith.constant 5 : index
    %c0_355 = arith.constant 0 : index
    %c0_356 = arith.constant 0 : index
    %639 = vector.load %arg5[%c0_354, %c5, %c0_355, %c0_356] : memref<1x8x16x16xf32, #tpu.memory_space<vmem>>, vector<1x1x16x16xf32>
    %640 = vector.shape_cast %639 : vector<1x1x16x16xf32> to vector<16x16xf32>
    %641 = vector.shape_cast %638 : vector<16x16xf32> to vector<1x1x16x16xf32>
    tpu.vector_store %arg5[%c0_354, %c5, %c0_355, %c0_356], %641 {strides = array<i32>} : memref<1x8x16x16xf32, #tpu.memory_space<vmem>>, vector<1x1x16x16xf32>,
    %cst_357 = arith.constant 0.000000e+00 : f32
    %642 = vector.broadcast %cst_357 : f32 to vector<16x16xf32>
    %cst_358 = arith.constant 0.000000e+00 : f32
    %643 = vector.broadcast %cst_358 : f32 to vector<16x16xf32>
    %c3_359 = arith.constant 3 : index
    %c0_360 = arith.constant 0 : index
    %c0_361 = arith.constant 0 : index
    %644 = vector.load %arg6[%c3_359, %c0_360, %c0_361] : memref<4x18x18xf32, #tpu.memory_space<vmem>>, vector<1x16x16xf32>
    %645 = vector.shape_cast %644 : vector<1x16x16xf32> to vector<16x16xf32>
    %c6_i32_362 = arith.constant 6 : i32
    %646 = arith.addi %0, %c6_i32_362 : i32
    %c0_i32_363 = arith.constant 0 : i32
    %647 = arith.addi %646, %c0_i32_363 : i32
    %c9_i32_364 = arith.constant 9 : i32
    %648 = arith.muli %647, %c9_i32_364 : i32
    %c0_i32_365 = arith.constant 0 : i32
    %649 = arith.addi %648, %c0_i32_365 : i32
    %650 = arith.index_cast %649 : i32 to index
    %651 = memref.load %arg3[%650] : memref<72xf32, #tpu.memory_space<smem>>
    %652 = vector.broadcast %651 : f32 to vector<16x16xf32>
    %653 = arith.mulf %645, %652 : vector<16x16xf32>
    %654 = arith.addf %642, %653 : vector<16x16xf32>
    %c6_i32_366 = arith.constant 6 : i32
    %655 = arith.addi %0, %c6_i32_366 : i32
    %c1_i32_367 = arith.constant 1 : i32
    %656 = arith.addi %655, %c1_i32_367 : i32
    %c9_i32_368 = arith.constant 9 : i32
    %657 = arith.muli %656, %c9_i32_368 : i32
    %c0_i32_369 = arith.constant 0 : i32
    %658 = arith.addi %657, %c0_i32_369 : i32
    %659 = arith.index_cast %658 : i32 to index
    %660 = memref.load %arg3[%659] : memref<72xf32, #tpu.memory_space<smem>>
    %661 = vector.broadcast %660 : f32 to vector<16x16xf32>
    %662 = arith.mulf %645, %661 : vector<16x16xf32>
    %663 = arith.addf %643, %662 : vector<16x16xf32>
    %c3_370 = arith.constant 3 : index
    %c0_371 = arith.constant 0 : index
    %c1_372 = arith.constant 1 : index
    %664 = vector.load %arg6[%c3_370, %c0_371, %c1_372] : memref<4x18x18xf32, #tpu.memory_space<vmem>>, vector<1x16x16xf32>
    %665 = vector.shape_cast %664 : vector<1x16x16xf32> to vector<16x16xf32>
    %c6_i32_373 = arith.constant 6 : i32
    %666 = arith.addi %0, %c6_i32_373 : i32
    %c0_i32_374 = arith.constant 0 : i32
    %667 = arith.addi %666, %c0_i32_374 : i32
    %c9_i32_375 = arith.constant 9 : i32
    %668 = arith.muli %667, %c9_i32_375 : i32
    %c1_i32_376 = arith.constant 1 : i32
    %669 = arith.addi %668, %c1_i32_376 : i32
    %670 = arith.index_cast %669 : i32 to index
    %671 = memref.load %arg3[%670] : memref<72xf32, #tpu.memory_space<smem>>
    %672 = vector.broadcast %671 : f32 to vector<16x16xf32>
    %673 = arith.mulf %665, %672 : vector<16x16xf32>
    %674 = arith.addf %654, %673 : vector<16x16xf32>
    %c6_i32_377 = arith.constant 6 : i32
    %675 = arith.addi %0, %c6_i32_377 : i32
    %c1_i32_378 = arith.constant 1 : i32
    %676 = arith.addi %675, %c1_i32_378 : i32
    %c9_i32_379 = arith.constant 9 : i32
    %677 = arith.muli %676, %c9_i32_379 : i32
    %c1_i32_380 = arith.constant 1 : i32
    %678 = arith.addi %677, %c1_i32_380 : i32
    %679 = arith.index_cast %678 : i32 to index
    %680 = memref.load %arg3[%679] : memref<72xf32, #tpu.memory_space<smem>>
    %681 = vector.broadcast %680 : f32 to vector<16x16xf32>
    %682 = arith.mulf %665, %681 : vector<16x16xf32>
    %683 = arith.addf %663, %682 : vector<16x16xf32>
    %c3_381 = arith.constant 3 : index
    %c0_382 = arith.constant 0 : index
    %c2_383 = arith.constant 2 : index
    %684 = vector.load %arg6[%c3_381, %c0_382, %c2_383] : memref<4x18x18xf32, #tpu.memory_space<vmem>>, vector<1x16x16xf32>
    %685 = vector.shape_cast %684 : vector<1x16x16xf32> to vector<16x16xf32>
    %c6_i32_384 = arith.constant 6 : i32
    %686 = arith.addi %0, %c6_i32_384 : i32
    %c0_i32_385 = arith.constant 0 : i32
    %687 = arith.addi %686, %c0_i32_385 : i32
    %c9_i32_386 = arith.constant 9 : i32
    %688 = arith.muli %687, %c9_i32_386 : i32
    %c2_i32_387 = arith.constant 2 : i32
    %689 = arith.addi %688, %c2_i32_387 : i32
    %690 = arith.index_cast %689 : i32 to index
    %691 = memref.load %arg3[%690] : memref<72xf32, #tpu.memory_space<smem>>
    %692 = vector.broadcast %691 : f32 to vector<16x16xf32>
    %693 = arith.mulf %685, %692 : vector<16x16xf32>
    %694 = arith.addf %674, %693 : vector<16x16xf32>
    %c6_i32_388 = arith.constant 6 : i32
    %695 = arith.addi %0, %c6_i32_388 : i32
    %c1_i32_389 = arith.constant 1 : i32
    %696 = arith.addi %695, %c1_i32_389 : i32
    %c9_i32_390 = arith.constant 9 : i32
    %697 = arith.muli %696, %c9_i32_390 : i32
    %c2_i32_391 = arith.constant 2 : i32
    %698 = arith.addi %697, %c2_i32_391 : i32
    %699 = arith.index_cast %698 : i32 to index
    %700 = memref.load %arg3[%699] : memref<72xf32, #tpu.memory_space<smem>>
    %701 = vector.broadcast %700 : f32 to vector<16x16xf32>
    %702 = arith.mulf %685, %701 : vector<16x16xf32>
    %703 = arith.addf %683, %702 : vector<16x16xf32>
    %c3_392 = arith.constant 3 : index
    %c1_393 = arith.constant 1 : index
    %c0_394 = arith.constant 0 : index
    %704 = vector.load %arg6[%c3_392, %c1_393, %c0_394] : memref<4x18x18xf32, #tpu.memory_space<vmem>>, vector<1x16x16xf32>
    %705 = vector.shape_cast %704 : vector<1x16x16xf32> to vector<16x16xf32>
    %c6_i32_395 = arith.constant 6 : i32
    %706 = arith.addi %0, %c6_i32_395 : i32
    %c0_i32_396 = arith.constant 0 : i32
    %707 = arith.addi %706, %c0_i32_396 : i32
    %c9_i32_397 = arith.constant 9 : i32
    %708 = arith.muli %707, %c9_i32_397 : i32
    %c3_i32_398 = arith.constant 3 : i32
    %709 = arith.addi %708, %c3_i32_398 : i32
    %710 = arith.index_cast %709 : i32 to index
    %711 = memref.load %arg3[%710] : memref<72xf32, #tpu.memory_space<smem>>
    %712 = vector.broadcast %711 : f32 to vector<16x16xf32>
    %713 = arith.mulf %705, %712 : vector<16x16xf32>
    %714 = arith.addf %694, %713 : vector<16x16xf32>
    %c6_i32_399 = arith.constant 6 : i32
    %715 = arith.addi %0, %c6_i32_399 : i32
    %c1_i32_400 = arith.constant 1 : i32
    %716 = arith.addi %715, %c1_i32_400 : i32
    %c9_i32_401 = arith.constant 9 : i32
    %717 = arith.muli %716, %c9_i32_401 : i32
    %c3_i32_402 = arith.constant 3 : i32
    %718 = arith.addi %717, %c3_i32_402 : i32
    %719 = arith.index_cast %718 : i32 to index
    %720 = memref.load %arg3[%719] : memref<72xf32, #tpu.memory_space<smem>>
    %721 = vector.broadcast %720 : f32 to vector<16x16xf32>
    %722 = arith.mulf %705, %721 : vector<16x16xf32>
    %723 = arith.addf %703, %722 : vector<16x16xf32>
    %c3_403 = arith.constant 3 : index
    %c1_404 = arith.constant 1 : index
    %c1_405 = arith.constant 1 : index
    %724 = vector.load %arg6[%c3_403, %c1_404, %c1_405] : memref<4x18x18xf32, #tpu.memory_space<vmem>>, vector<1x16x16xf32>
    %725 = vector.shape_cast %724 : vector<1x16x16xf32> to vector<16x16xf32>
    %c6_i32_406 = arith.constant 6 : i32
    %726 = arith.addi %0, %c6_i32_406 : i32
    %c0_i32_407 = arith.constant 0 : i32
    %727 = arith.addi %726, %c0_i32_407 : i32
    %c9_i32_408 = arith.constant 9 : i32
    %728 = arith.muli %727, %c9_i32_408 : i32
    %c4_i32_409 = arith.constant 4 : i32
    %729 = arith.addi %728, %c4_i32_409 : i32
    %730 = arith.index_cast %729 : i32 to index
    %731 = memref.load %arg3[%730] : memref<72xf32, #tpu.memory_space<smem>>
    %732 = vector.broadcast %731 : f32 to vector<16x16xf32>
    %733 = arith.mulf %725, %732 : vector<16x16xf32>
    %734 = arith.addf %714, %733 : vector<16x16xf32>
    %c6_i32_410 = arith.constant 6 : i32
    %735 = arith.addi %0, %c6_i32_410 : i32
    %c1_i32_411 = arith.constant 1 : i32
    %736 = arith.addi %735, %c1_i32_411 : i32
    %c9_i32_412 = arith.constant 9 : i32
    %737 = arith.muli %736, %c9_i32_412 : i32
    %c4_i32_413 = arith.constant 4 : i32
    %738 = arith.addi %737, %c4_i32_413 : i32
    %739 = arith.index_cast %738 : i32 to index
    %740 = memref.load %arg3[%739] : memref<72xf32, #tpu.memory_space<smem>>
    %741 = vector.broadcast %740 : f32 to vector<16x16xf32>
    %742 = arith.mulf %725, %741 : vector<16x16xf32>
    %743 = arith.addf %723, %742 : vector<16x16xf32>
    %c3_414 = arith.constant 3 : index
    %c1_415 = arith.constant 1 : index
    %c2_416 = arith.constant 2 : index
    %744 = vector.load %arg6[%c3_414, %c1_415, %c2_416] : memref<4x18x18xf32, #tpu.memory_space<vmem>>, vector<1x16x16xf32>
    %745 = vector.shape_cast %744 : vector<1x16x16xf32> to vector<16x16xf32>
    %c6_i32_417 = arith.constant 6 : i32
    %746 = arith.addi %0, %c6_i32_417 : i32
    %c0_i32_418 = arith.constant 0 : i32
    %747 = arith.addi %746, %c0_i32_418 : i32
    %c9_i32_419 = arith.constant 9 : i32
    %748 = arith.muli %747, %c9_i32_419 : i32
    %c5_i32_420 = arith.constant 5 : i32
    %749 = arith.addi %748, %c5_i32_420 : i32
    %750 = arith.index_cast %749 : i32 to index
    %751 = memref.load %arg3[%750] : memref<72xf32, #tpu.memory_space<smem>>
    %752 = vector.broadcast %751 : f32 to vector<16x16xf32>
    %753 = arith.mulf %745, %752 : vector<16x16xf32>
    %754 = arith.addf %734, %753 : vector<16x16xf32>
    %c6_i32_421 = arith.constant 6 : i32
    %755 = arith.addi %0, %c6_i32_421 : i32
    %c1_i32_422 = arith.constant 1 : i32
    %756 = arith.addi %755, %c1_i32_422 : i32
    %c9_i32_423 = arith.constant 9 : i32
    %757 = arith.muli %756, %c9_i32_423 : i32
    %c5_i32_424 = arith.constant 5 : i32
    %758 = arith.addi %757, %c5_i32_424 : i32
    %759 = arith.index_cast %758 : i32 to index
    %760 = memref.load %arg3[%759] : memref<72xf32, #tpu.memory_space<smem>>
    %761 = vector.broadcast %760 : f32 to vector<16x16xf32>
    %762 = arith.mulf %745, %761 : vector<16x16xf32>
    %763 = arith.addf %743, %762 : vector<16x16xf32>
    %c3_425 = arith.constant 3 : index
    %c2_426 = arith.constant 2 : index
    %c0_427 = arith.constant 0 : index
    %764 = vector.load %arg6[%c3_425, %c2_426, %c0_427] : memref<4x18x18xf32, #tpu.memory_space<vmem>>, vector<1x16x16xf32>
    %765 = vector.shape_cast %764 : vector<1x16x16xf32> to vector<16x16xf32>
    %c6_i32_428 = arith.constant 6 : i32
    %766 = arith.addi %0, %c6_i32_428 : i32
    %c0_i32_429 = arith.constant 0 : i32
    %767 = arith.addi %766, %c0_i32_429 : i32
    %c9_i32_430 = arith.constant 9 : i32
    %768 = arith.muli %767, %c9_i32_430 : i32
    %c6_i32_431 = arith.constant 6 : i32
    %769 = arith.addi %768, %c6_i32_431 : i32
    %770 = arith.index_cast %769 : i32 to index
    %771 = memref.load %arg3[%770] : memref<72xf32, #tpu.memory_space<smem>>
    %772 = vector.broadcast %771 : f32 to vector<16x16xf32>
    %773 = arith.mulf %765, %772 : vector<16x16xf32>
    %774 = arith.addf %754, %773 : vector<16x16xf32>
    %c6_i32_432 = arith.constant 6 : i32
    %775 = arith.addi %0, %c6_i32_432 : i32
    %c1_i32_433 = arith.constant 1 : i32
    %776 = arith.addi %775, %c1_i32_433 : i32
    %c9_i32_434 = arith.constant 9 : i32
    %777 = arith.muli %776, %c9_i32_434 : i32
    %c6_i32_435 = arith.constant 6 : i32
    %778 = arith.addi %777, %c6_i32_435 : i32
    %779 = arith.index_cast %778 : i32 to index
    %780 = memref.load %arg3[%779] : memref<72xf32, #tpu.memory_space<smem>>
    %781 = vector.broadcast %780 : f32 to vector<16x16xf32>
    %782 = arith.mulf %765, %781 : vector<16x16xf32>
    %783 = arith.addf %763, %782 : vector<16x16xf32>
    %c3_436 = arith.constant 3 : index
    %c2_437 = arith.constant 2 : index
    %c1_438 = arith.constant 1 : index
    %784 = vector.load %arg6[%c3_436, %c2_437, %c1_438] : memref<4x18x18xf32, #tpu.memory_space<vmem>>, vector<1x16x16xf32>
    %785 = vector.shape_cast %784 : vector<1x16x16xf32> to vector<16x16xf32>
    %c6_i32_439 = arith.constant 6 : i32
    %786 = arith.addi %0, %c6_i32_439 : i32
    %c0_i32_440 = arith.constant 0 : i32
    %787 = arith.addi %786, %c0_i32_440 : i32
    %c9_i32_441 = arith.constant 9 : i32
    %788 = arith.muli %787, %c9_i32_441 : i32
    %c7_i32_442 = arith.constant 7 : i32
    %789 = arith.addi %788, %c7_i32_442 : i32
    %790 = arith.index_cast %789 : i32 to index
    %791 = memref.load %arg3[%790] : memref<72xf32, #tpu.memory_space<smem>>
    %792 = vector.broadcast %791 : f32 to vector<16x16xf32>
    %793 = arith.mulf %785, %792 : vector<16x16xf32>
    %794 = arith.addf %774, %793 : vector<16x16xf32>
    %c6_i32_443 = arith.constant 6 : i32
    %795 = arith.addi %0, %c6_i32_443 : i32
    %c1_i32_444 = arith.constant 1 : i32
    %796 = arith.addi %795, %c1_i32_444 : i32
    %c9_i32_445 = arith.constant 9 : i32
    %797 = arith.muli %796, %c9_i32_445 : i32
    %c7_i32_446 = arith.constant 7 : i32
    %798 = arith.addi %797, %c7_i32_446 : i32
    %799 = arith.index_cast %798 : i32 to index
    %800 = memref.load %arg3[%799] : memref<72xf32, #tpu.memory_space<smem>>
    %801 = vector.broadcast %800 : f32 to vector<16x16xf32>
    %802 = arith.mulf %785, %801 : vector<16x16xf32>
    %803 = arith.addf %783, %802 : vector<16x16xf32>
    %c3_447 = arith.constant 3 : index
    %c2_448 = arith.constant 2 : index
    %c2_449 = arith.constant 2 : index
    %804 = vector.load %arg6[%c3_447, %c2_448, %c2_449] : memref<4x18x18xf32, #tpu.memory_space<vmem>>, vector<1x16x16xf32>
    %805 = vector.shape_cast %804 : vector<1x16x16xf32> to vector<16x16xf32>
    %c6_i32_450 = arith.constant 6 : i32
    %806 = arith.addi %0, %c6_i32_450 : i32
    %c0_i32_451 = arith.constant 0 : i32
    %807 = arith.addi %806, %c0_i32_451 : i32
    %c9_i32_452 = arith.constant 9 : i32
    %808 = arith.muli %807, %c9_i32_452 : i32
    %c8_i32_453 = arith.constant 8 : i32
    %809 = arith.addi %808, %c8_i32_453 : i32
    %810 = arith.index_cast %809 : i32 to index
    %811 = memref.load %arg3[%810] : memref<72xf32, #tpu.memory_space<smem>>
    %812 = vector.broadcast %811 : f32 to vector<16x16xf32>
    %813 = arith.mulf %805, %812 : vector<16x16xf32>
    %814 = arith.addf %794, %813 : vector<16x16xf32>
    %c6_i32_454 = arith.constant 6 : i32
    %815 = arith.addi %0, %c6_i32_454 : i32
    %c1_i32_455 = arith.constant 1 : i32
    %816 = arith.addi %815, %c1_i32_455 : i32
    %c9_i32_456 = arith.constant 9 : i32
    %817 = arith.muli %816, %c9_i32_456 : i32
    %c8_i32_457 = arith.constant 8 : i32
    %818 = arith.addi %817, %c8_i32_457 : i32
    %819 = arith.index_cast %818 : i32 to index
    %820 = memref.load %arg3[%819] : memref<72xf32, #tpu.memory_space<smem>>
    %821 = vector.broadcast %820 : f32 to vector<16x16xf32>
    %822 = arith.mulf %805, %821 : vector<16x16xf32>
    %823 = arith.addf %803, %822 : vector<16x16xf32>
    %c6_i32_458 = arith.constant 6 : i32
    %824 = arith.addi %0, %c6_i32_458 : i32
    %c0_i32_459 = arith.constant 0 : i32
    %825 = arith.addi %824, %c0_i32_459 : i32
    %826 = arith.index_cast %825 : i32 to index
    %827 = memref.load %arg4[%826] : memref<8xf32, #tpu.memory_space<smem>>
    %828 = vector.broadcast %827 : f32 to vector<16x16xf32>
    %829 = arith.addf %814, %828 : vector<16x16xf32>
    %cst_460 = arith.constant 0.000000e+00 : f32
    %830 = vector.broadcast %cst_460 : f32 to vector<16x16xf32>
    %831 = arith.cmpf oge, %829, %830 : vector<16x16xf32>
    %cst_461 = arith.constant 0.00999999977 : f32
    %832 = vector.broadcast %cst_461 : f32 to vector<16x16xf32>
    %833 = arith.mulf %832, %829 : vector<16x16xf32>
    %834 = arith.select %831, %829, %833 : vector<16x16xi1>, vector<16x16xf32>
    %c0_462 = arith.constant 0 : index
    %c6 = arith.constant 6 : index
    %c0_463 = arith.constant 0 : index
    %c0_464 = arith.constant 0 : index
    %835 = vector.load %arg5[%c0_462, %c6, %c0_463, %c0_464] : memref<1x8x16x16xf32, #tpu.memory_space<vmem>>, vector<1x1x16x16xf32>
    %836 = vector.shape_cast %835 : vector<1x1x16x16xf32> to vector<16x16xf32>
    %837 = vector.shape_cast %834 : vector<16x16xf32> to vector<1x1x16x16xf32>
    tpu.vector_store %arg5[%c0_462, %c6, %c0_463, %c0_464], %837 {strides = array<i32>} : memref<1x8x16x16xf32, #tpu.memory_space<vmem>>, vector<1x1x16x16xf32>,
    %c6_i32_465 = arith.constant 6 : i32
    %838 = arith.addi %0, %c6_i32_465 : i32
    %c1_i32_466 = arith.constant 1 : i32
    %839 = arith.addi %838, %c1_i32_466 : i32
    %840 = arith.index_cast %839 : i32 to index
    %841 = memref.load %arg4[%840] : memref<8xf32, #tpu.memory_space<smem>>
    %842 = vector.broadcast %841 : f32 to vector<16x16xf32>
    %843 = arith.addf %823, %842 : vector<16x16xf32>
    %cst_467 = arith.constant 0.000000e+00 : f32
    %844 = vector.broadcast %cst_467 : f32 to vector<16x16xf32>
    %845 = arith.cmpf oge, %843, %844 : vector<16x16xf32>
    %cst_468 = arith.constant 0.00999999977 : f32
    %846 = vector.broadcast %cst_468 : f32 to vector<16x16xf32>
    %847 = arith.mulf %846, %843 : vector<16x16xf32>
    %848 = arith.select %845, %843, %847 : vector<16x16xi1>, vector<16x16xf32>
    %c0_469 = arith.constant 0 : index
    %c7 = arith.constant 7 : index
    %c0_470 = arith.constant 0 : index
    %c0_471 = arith.constant 0 : index
    %849 = vector.load %arg5[%c0_469, %c7, %c0_470, %c0_471] : memref<1x8x16x16xf32, #tpu.memory_space<vmem>>, vector<1x1x16x16xf32>
    %850 = vector.shape_cast %849 : vector<1x1x16x16xf32> to vector<16x16xf32>
    %851 = vector.shape_cast %848 : vector<16x16xf32> to vector<1x1x16x16xf32>
    tpu.vector_store %arg5[%c0_469, %c7, %c0_470, %c0_471], %851 {strides = array<i32>} : memref<1x8x16x16xf32, #tpu.memory_space<vmem>>, vector<1x1x16x16xf32>,
    return
  }
  func.func @transform_0(%arg0: i32, %arg1: i32) -> (i32, i32, i32, i32) {
    %c0_i32 = arith.constant 0 : i32
    %c0_i32_0 = arith.constant 0 : i32
    %c0_i32_1 = arith.constant 0 : i32
    return %arg0, %arg1, %c0_i32, %c0_i32_0 : i32, i32, i32, i32
  }
  func.func @transform_1(%arg0: i32, %arg1: i32) -> i32 {
    %c0_i32 = arith.constant 0 : i32
    %c0_i32_0 = arith.constant 0 : i32
    return %c0_i32 : i32
  }
  func.func @transform_2(%arg0: i32, %arg1: i32) -> i32 {
    %c0_i32 = arith.constant 0 : i32
    %c0_i32_0 = arith.constant 0 : i32
    return %c0_i32 : i32
  }
  func.func @transform_3(%arg0: i32, %arg1: i32) -> (i32, i32, i32, i32) {
    %c0_i32 = arith.constant 0 : i32
    %c0_i32_0 = arith.constant 0 : i32
    %c0_i32_1 = arith.constant 0 : i32
    return %arg0, %arg1, %c0_i32, %c0_i32_0 : i32, i32, i32, i32
  }
}

</mosaic_0001>

<llo_original>
// kernel: tpu_custom_call.1
$region0: #{tpu_custom_call.1}
  #allocation0 [shape = 'u32[]', space=smem, size = 0x4, offset = 0x4, fixed_abs, tag = 'smem constant byte address 0x4 - core index']
  #allocation1 [shape = 'u32[144,128]{1,0:T(1,128)}', space=vmem, size = 0x12000, scoped, tag = 'internal scratch']
  #allocation2 [shape = 'f32[4,18,18]{2,1,0:T(8,128)}', space=vmem, size = 0xc000, scoped, tag = 'scratch operand']
  %s0 = inlined_call_operand.hbm [shape: f32[2,4,16,16], index: 0, kind: input, shape index: {}]
  %s1 = inlined_call_operand.vmem [shape: f32[72], index: 1, kind: input, shape index: {}]
  %s2 = inlined_call_operand.vmem [shape: f32[8], index: 2, kind: input, shape index: {}]
  %s3 = inlined_call_operand.hbm [shape: f32[2,8,16,16], index: 3, kind: output, shape index: {}]
  %s4 = sld [smem:[#allocation0]]
  $region57: #{tpu_custom_call.1} parent=0
    _
  %s6 = ssub.s32 1, %s4
  %s7 = scalar_select 0, %s6, %s4
  $region1: #{tpu_custom_call.1} parent=0
    #allocation3 [shape = 'u8[65536]{0}', space=vmem, size = 0x10000, scoped, tag = 'input window, operand 0']
    #allocation4 [shape = 's32[2]{0}', space=sflag, size = 0x8, scoped, tag = 'scoped memory for tpu_custom_call.1']
    #allocation5 [shape = 's32[2]{0}', space=sflag, size = 0x8, scoped, tag = 'scoped memory for tpu_custom_call.1']
    #allocation6 [shape = 's32[2]{0}', space=sflag, size = 0x8, scoped, tag = 'scoped memory for tpu_custom_call.1']
    #allocation7 [shape = 'u8[512]{0}', space=smem, size = 0x200, scoped, tag = 'input window, operand 1, single buffered']
    #allocation8 [shape = 'u8[512]{0}', space=smem, size = 0x200, scoped, tag = 'input window, operand 2, single buffered']
    #allocation9 [shape = 's32[1]{0}', space=sflag, size = 0x4, scoped, tag = 'scoped memory for tpu_custom_call.1']
    #allocation10 [shape = 'u8[131072]{0}', space=vmem, size = 0x20000, scoped, tag = 'output window, operand 0']
    %8 = vsyncpa [#allocation4], 0
    %s9 = scalar_lea.sflag [#allocation4], 1
    %10 = vsyncpa %s9, 0
    %11 = vsyncpa [#allocation6], 0
    %12 = vsyncpa [#allocation9], 0
    %13 = vsyncpa [#allocation5], 0
    %s14 = scalar_lea.sflag [#allocation5], 1
    %15 = vsyncpa %s14, 0
    loop: start=0, step=1, limit=4
    $region2: #{tpu_custom_call.1} parent=1 // loop_pre_header
      _
    $region3: #{tpu_custom_call.1} parent=1 // loop_header
      %s17 = sphi 0, %s21
      %p18 = scmp.ge.s32.totalorder %s17, 4
      %s24 = sphi 0, %s36
      %s25 = sphi 0, %s32
      %s26 = sphi 0, %s24
      %s27 = sphi 0, %s25
      %s28 = sphi 0, %s26
      %s29 = sphi 0, %s27
      %s41 = sphi 0, %s43
      %s44 = sphi 0, %s41
      %s45 = sphi 0, %s44
      %s61 = sphi 0, %s45
      %s65 = sphi 0, %s65
      %s67 = sphi 0, %s65
      %s68 = sphi 0, %s67
      %s82 = sphi 0, %s68
      %s86 = sphi 0, %s86
      %s88 = sphi 0, %s86
      %s89 = sphi 0, %s88
      %s103 = sphi 0, %s89
      %s111 = sphi 0, %s113
      %s114 = sphi 0, %s111
      %s115 = sphi 0, %s114
      %s131 = sphi 0, %s115
    $region4: #{tpu_custom_call.1} parent=1 // loop_header_branch
      %20 = sbr.rel (%p18) target = $region8
    $region5: #{tpu_custom_call.1} parent=1 // loop_body
      %s22 = ssub.s32 %s17, 1
      %s23 = ssub.s32 %s17, 2
      %s30 = sadd.s32 1, %s25
      %p31 = scmp.ge.s32.totalorder %s30, 1
      %s32 = scalar_select %p31, 0, %s30
      %s33 = sadd.s32 1, %s24
      %s34 = scalar_select %p31, %s33, %s24
      %p35 = scmp.ge.s32.totalorder %s34, 2
      %s36 = scalar_select %p35, 0, %s34
      %s37 = ssub.s32 %s24, %s36
      %s38 = ssub.s32 %s25, %s32
      %s39 = sor.u32 %s37, %s38
      %p40 = scmp.eq.s32.totalorder %s39, 0
      %s42 = sadd.s32 %s41, 1
      %s43 = scalar_select %p40, %s41, %s42
      %p46 = pneg %p40
      %p47 = scmp.eq.s32.totalorder %s17, 1
      %p48 = por %p46, %p47
      %p49 = scmp.ne.s32.totalorder %s41, %s44
      %p50 = scmp.eq.s32.totalorder %s17, 0
      %p51 = por %p49, %p50
      %p52 = scmp.ne.s32.totalorder %s41, %s44
      %p53 = scmp.eq.s32.totalorder %s22, 1
      %p54 = por %p52, %p53
      %p55 = scmp.ne.s32.totalorder %s44, %s45
      %p56 = scmp.eq.s32.totalorder %s22, 0
      %p57 = por %p55, %p56
      %p58 = scmp.ne.s32.totalorder %s44, %s45
      %p59 = scmp.eq.s32.totalorder %s23, 1
      %p60 = por %p58, %p59
      %p62 = scmp.ne.s32.totalorder %s45, %s61
      %p63 = scmp.eq.s32.totalorder %s23, 0
      %p64 = por %p62, %p63
      %s66 = sadd.s32 %s65, 1
      %p69 = scmp.eq.s32.totalorder %s17, 1
      %p70 = scmp.ne.s32.totalorder %s65, %s67
      %p71 = scmp.eq.s32.totalorder %s17, 0
      %p72 = por %p70, %p71
      %p73 = scmp.ne.s32.totalorder %s65, %s67
      %p74 = scmp.eq.s32.totalorder %s22, 1
      %p75 = por %p73, %p74
      %p76 = scmp.ne.s32.totalorder %s67, %s68
      %p77 = scmp.eq.s32.totalorder %s22, 0
      %p78 = por %p76, %p77
      %p79 = scmp.ne.s32.totalorder %s67, %s68
      %p80 = scmp.eq.s32.totalorder %s23, 1
      %p81 = por %p79, %p80
      %p83 = scmp.ne.s32.totalorder %s68, %s82
      %p84 = scmp.eq.s32.totalorder %s23, 0
      %p85 = por %p83, %p84
      %s87 = sadd.s32 %s86, 1
      %p90 = scmp.eq.s32.totalorder %s17, 1
      %p91 = scmp.ne.s32.totalorder %s86, %s88
      %p92 = scmp.eq.s32.totalorder %s17, 0
      %p93 = por %p91, %p92
      %p94 = scmp.ne.s32.totalorder %s86, %s88
      %p95 = scmp.eq.s32.totalorder %s22, 1
      %p96 = por %p94, %p95
      %p97 = scmp.ne.s32.totalorder %s88, %s89
      %p98 = scmp.eq.s32.totalorder %s22, 0
      %p99 = por %p97, %p98
      %p100 = scmp.ne.s32.totalorder %s88, %s89
      %p101 = scmp.eq.s32.totalorder %s23, 1
      %p102 = por %p100, %p101
      %p104 = scmp.ne.s32.totalorder %s89, %s103
      %p105 = scmp.eq.s32.totalorder %s23, 0
      %p106 = por %p104, %p105
      %s107 = ssub.s32 %s24, %s36
      %s108 = ssub.s32 %s25, %s32
      %s109 = sor.u32 %s107, %s108
      %p110 = scmp.eq.s32.totalorder %s109, 0
      %s112 = sadd.s32 %s111, 1
      %s113 = scalar_select %p110, %s111, %s112
      %p116 = pneg %p110
      %p117 = scmp.eq.s32.totalorder %s17, 1
      %p118 = por %p116, %p117
      %p119 = scmp.ne.s32.totalorder %s111, %s114
      %p120 = scmp.eq.s32.totalorder %s17, 0
      %p121 = por %p119, %p120
      %p122 = scmp.ne.s32.totalorder %s111, %s114
      %p123 = scmp.eq.s32.totalorder %s22, 1
      %p124 = por %p122, %p123
      %p125 = scmp.ne.s32.totalorder %s114, %s115
      %p126 = scmp.eq.s32.totalorder %s22, 0
      %p127 = por %p125, %p126
      %p128 = scmp.ne.s32.totalorder %s114, %s115
      %p129 = scmp.eq.s32.totalorder %s23, 1
      %p130 = por %p128, %p129
      %p132 = scmp.ne.s32.totalorder %s115, %s131
      %p133 = scmp.eq.s32.totalorder %s23, 0
      %p134 = por %p132, %p133
      %p135 = scmp.le.s32.totalorder 1, %s17
      %p136 = scmp.lt.s32.totalorder %s17, 3
      %p137 = pnand %p135, %p136
      %p138 = pneg %p137
      // Predicated region
      $region9: #{tpu_custom_call.1} parent=5 // pred_check
        _
      $region10: #{tpu_custom_call.1} parent=5 // pred_check_branch
        %140 = sbr.rel (%p137) target = $region12
      $region11: #{tpu_custom_call.1} parent=5 // pred_region
        %s141 = ssub.s32 %s17, 1
        // Predicated region
        $region13: #{tpu_custom_call.1} parent=11 // pred_check
          %p142 = pneg %p78
        $region14: #{tpu_custom_call.1} parent=11 // pred_check_branch
          %144 = sbr.rel (%p142) target = $region16
        $region15: #{tpu_custom_call.1} parent=11 // pred_region
          %s146 = ssub.s32 16, 16
          %147 = vsyncadd [#allocation6], %s146
          %s149 = sshll.u32 %s1, 4
          %s150 = int_to_ptr.vmem [resolvable:$true] %s149
          %152 = dma.vmem_to_smem %s150, 16, [#allocation7], [#allocation6]
        $region16: #{tpu_custom_call.1} parent=11 // pred_fallthru
          _
        // Predicated region
        $region17: #{tpu_custom_call.1} parent=11 // pred_check
          %p153 = pneg %p99
        $region18: #{tpu_custom_call.1} parent=11 // pred_check_branch
          %155 = sbr.rel (%p153) target = $region20
        $region19: #{tpu_custom_call.1} parent=11 // pred_region
          %s157 = ssub.s32 16, 16
          %158 = vsyncadd [#allocation9], %s157
          %s160 = sshll.u32 %s2, 4
          %s161 = int_to_ptr.vmem [resolvable:$true] %s160
          %163 = dma.vmem_to_smem %s161, 16, [#allocation8], [#allocation9]
        $region20: #{tpu_custom_call.1} parent=11 // pred_fallthru
          _
      $region12: #{tpu_custom_call.1} parent=5 // pred_fallthru
        _
      %p164 = scmp.lt.s32.totalorder %s17, 2
      // Predicated region
      $region21: #{tpu_custom_call.1} parent=5 // pred_check
        %p165 = pneg %p164
      $region22: #{tpu_custom_call.1} parent=5 // pred_check_branch
        %167 = sbr.rel (%p165) target = $region24
      $region23: #{tpu_custom_call.1} parent=5 // pred_region
        // Predicated region
        $region25: #{tpu_custom_call.1} parent=23 // pred_check
          %p168 = pneg %p51
        $region26: #{tpu_custom_call.1} parent=23 // pred_check_branch
          %170 = sbr.rel (%p168) target = $region28
        $region27: #{tpu_custom_call.1} parent=23 // pred_region
          %s171 = sand.u32 %s41, 1
          %s172 = scalar_lea.sflag [#allocation4], %s171
          %s173 = sand.u32 %s41, 1
          %s174 = smul.addr %s173, 64
          %s175 = scalar_lea.vmem [#allocation3], %s174
          %s176 = smul.u32 4, %s25
          %s178 = ssub.s32 1024, 1024
          %179 = vsyncadd %s172, %s178
          %s180 = smul.addr %s176, 2
          %s181 = smul.addr %s24, 8
          %s182 = sadd.s32 %s180, %s181
          %s183 = smul.addr %s182, 128
          %s184 = scalar_lea.hbm %s0, %s183
          %s185 = sshll.u32 %s175, 4
          %s186 = int_to_ptr.vmem [resolvable:$true] %s185
          %191 = dma.hbm_to_vmem [thread:$0]  %s184, 1024, %s186, %s172, 128, 128, 8
        $region28: #{tpu_custom_call.1} parent=23 // pred_fallthru
          _
      $region24: #{tpu_custom_call.1} parent=5 // pred_fallthru
        _
      %p192 = scmp.le.s32.totalorder 1, %s17
      %p193 = scmp.lt.s32.totalorder %s17, 3
      %p194 = pnand %p192, %p193
      %p195 = pneg %p194
      // Predicated region
      $region29: #{tpu_custom_call.1} parent=5 // pred_check
        _
      $region30: #{tpu_custom_call.1} parent=5 // pred_check_branch
        %197 = sbr.rel (%p194) target = $region32
      $region31: #{tpu_custom_call.1} parent=5 // pred_region
        %s198 = ssub.s32 %s17, 1
        %s199 = sand.u32 %s44, 1
        %s200 = scalar_lea.sflag [#allocation4], %s199
        %s201 = sand.u32 %s44, 1
        %s202 = smul.addr %s201, 64
        %s203 = scalar_lea.vmem [#allocation3], %s202
        // Predicated region
        $region33: #{tpu_custom_call.1} parent=31 // pred_check
          %p204 = pneg %p57
        $region34: #{tpu_custom_call.1} parent=31 // pred_check_branch
          %206 = sbr.rel (%p204) target = $region36
        $region35: #{tpu_custom_call.1} parent=31 // pred_region
          %207 = dma.done %s200, 1024
        $region36: #{tpu_custom_call.1} parent=31 // pred_fallthru
          _
        // Predicated region
        $region37: #{tpu_custom_call.1} parent=31 // pred_check
          %p208 = pneg %p78
        $region38: #{tpu_custom_call.1} parent=31 // pred_check_branch
          %210 = sbr.rel (%p208) target = $region40
        $region39: #{tpu_custom_call.1} parent=31 // pred_region
          %211 = dma.done [#allocation6], 16
        $region40: #{tpu_custom_call.1} parent=31 // pred_fallthru
          _
        // Predicated region
        $region41: #{tpu_custom_call.1} parent=31 // pred_check
          %p212 = pneg %p99
        $region42: #{tpu_custom_call.1} parent=31 // pred_check_branch
          %214 = sbr.rel (%p212) target = $region44
        $region43: #{tpu_custom_call.1} parent=31 // pred_region
          %215 = dma.done [#allocation9], 16
        $region44: #{tpu_custom_call.1} parent=31 // pred_fallthru
          _
        %216 = sfence
        %s217 = sand.u32 %s44, 1
        %s218 = scalar_lea.sflag [#allocation4], %s217
        %s219 = sand.u32 %s44, 1
        %s220 = smul.addr %s219, 64
        %s221 = scalar_lea.vmem [#allocation3], %s220
        %p222 = pneg %p57
        %p223 = pneg %p54
        %p224 = pneg %p78
        %p225 = pneg %p75
        %p226 = pneg %p99
        %p227 = pneg %p96
        %p228 = pneg %p127
        %p229 = pneg %p124
        %s230 = sand.u32 %s114, 1
        %s231 = scalar_lea.sflag [#allocation5], %s230
        %s232 = sand.u32 %s114, 1
        %s233 = smul.addr %s232, 128
        %s234 = scalar_lea.vmem [#allocation10], %s233
        %s235 = smul.u32 4, %s27
        %s236 = smul.u32 8, %s27
        %s237 = smul.u32 %s27, 8
        %vm238 = vcmask 139264
        %239 = vst.msk [vmem:[#allocation2] sm:$0x1] %vm238, 0.0
        %240 = vst.msk [vmem:[#allocation2 + $0x18] sm:$0x1] %vm238, 0.0
        %241 = vst.msk [vmem:[#allocation2 + $0x30] sm:$0x1] %vm238, 0.0
        %242 = vst.msk [vmem:[#allocation2 + $0x48] sm:$0x1] %vm238, 0.0
        %243 = vst.msk [vmem:[#allocation2 + $0x11] sm:$0x1] %vm238, 0.0
        %244 = vst.msk [vmem:[#allocation2 + $0x29] sm:$0x1] %vm238, 0.0
        %245 = vst.msk [vmem:[#allocation2 + $0x41] sm:$0x1] %vm238, 0.0
        %246 = vst.msk [vmem:[#allocation2 + $0x59] sm:$0x1] %vm238, 0.0
        %vm247 = vcmask 7168
        %248 = vst.msk [vmem:[#allocation2] sm:$0xff] %vm247, 0.0
        %249 = vst.msk [vmem:[#allocation2 + $0x8] sm:$0xff] %vm247, 0.0
        %vm250 = vcmask 1024
        %251 = vst.msk [vmem:[#allocation2 + $0x10] sm:$0x3] %vm250, 0.0
        %252 = vst.msk [vmem:[#allocation2 + $0x18] sm:$0xff] %vm247, 0.0
        %253 = vst.msk [vmem:[#allocation2 + $0x20] sm:$0xff] %vm247, 0.0
        %254 = vst.msk [vmem:[#allocation2 + $0x28] sm:$0x3] %vm250, 0.0
        %255 = vst.msk [vmem:[#allocation2 + $0x30] sm:$0xff] %vm247, 0.0
        %256 = vst.msk [vmem:[#allocation2 + $0x38] sm:$0xff] %vm247, 0.0
        %257 = vst.msk [vmem:[#allocation2 + $0x40] sm:$0x3] %vm250, 0.0
        %258 = vst.msk [vmem:[#allocation2 + $0x48] sm:$0xff] %vm247, 0.0
        %259 = vst.msk [vmem:[#allocation2 + $0x50] sm:$0xff] %vm247, 0.0
        %260 = vst.msk [vmem:[#allocation2 + $0x58] sm:$0x3] %vm250, 0.0
        %vm261 = vcmask 146568
        %262 = vst.msk [vmem:[#allocation2] sm:$0xff] %vm261, 0.0
        %263 = vst.msk [vmem:[#allocation2 + $0x8] sm:$0xff] %vm261, 0.0
        %vm264 = vcmask 140424
        %265 = vst.msk [vmem:[#allocation2 + $0x10] sm:$0x3] %vm264, 0.0
        %266 = vst.msk [vmem:[#allocation2 + $0x18] sm:$0xff] %vm261, 0.0
        %267 = vst.msk [vmem:[#allocation2 + $0x20] sm:$0xff] %vm261, 0.0
        %268 = vst.msk [vmem:[#allocation2 + $0x28] sm:$0x3] %vm264, 0.0
        %269 = vst.msk [vmem:[#allocation2 + $0x30] sm:$0xff] %vm261, 0.0
        %270 = vst.msk [vmem:[#allocation2 + $0x38] sm:$0xff] %vm261, 0.0
        %271 = vst.msk [vmem:[#allocation2 + $0x40] sm:$0x3] %vm264, 0.0
        %272 = vst.msk [vmem:[#allocation2 + $0x48] sm:$0xff] %vm261, 0.0
        %273 = vst.msk [vmem:[#allocation2 + $0x50] sm:$0xff] %vm261, 0.0
        %274 = vst.msk [vmem:[#allocation2 + $0x58] sm:$0x3] %vm264, 0.0
        %v275 = vld [vmem:[%s203] sm:$0xff]
        %v276 = vld [vmem:[%s203 + $0x8] sm:$0xff]
        %v277 = vld [vmem:[%s203 + $0x10] sm:$0xff]
        %v278 = vld [vmem:[%s203 + $0x18] sm:$0xff]
        %v279 = vld [vmem:[%s203 + $0x20] sm:$0xff]
        %v280 = vld [vmem:[%s203 + $0x28] sm:$0xff]
        %v281 = vld [vmem:[%s203 + $0x30] sm:$0xff]
        %v282 = vld [vmem:[%s203 + $0x38] sm:$0xff]
        %291 = vrot.lane.b32.xlu0 %v275, 1
        %v292 = vpop.permute.xlu0 %291
        %293 = vrot.lane.b32.xlu0 %v276, 1
        %v294 = vpop.permute.xlu0 %293
        %295 = vrot.lane.b32.xlu0 %v277, 1
        %v296 = vpop.permute.xlu0 %295
        %297 = vrot.lane.b32.xlu0 %v278, 1
        %v298 = vpop.permute.xlu0 %297
        %299 = vrot.lane.b32.xlu0 %v279, 1
        %v300 = vpop.permute.xlu0 %299
        %301 = vrot.lane.b32.xlu0 %v280, 1
        %v302 = vpop.permute.xlu0 %301
        %303 = vrot.lane.b32.xlu0 %v281, 1
        %v304 = vpop.permute.xlu0 %303
        %305 = vrot.lane.b32.xlu0 %v282, 1
        %v306 = vpop.permute.xlu0 %305
        %vm315 = vcmask 138248
        %316 = vst.msk [vmem:[#allocation2 + $0x1] sm:$0xff] %vm315, %v292
        %317 = vst.msk [vmem:[#allocation2 + $0x9] sm:$0xff] %vm315, %v294
        %318 = vst.msk [vmem:[#allocation2 + $0x19] sm:$0xff] %vm315, %v296
        %319 = vst.msk [vmem:[#allocation2 + $0x21] sm:$0xff] %vm315, %v298
        %320 = vst.msk [vmem:[#allocation2 + $0x31] sm:$0xff] %vm315, %v300
        %321 = vst.msk [vmem:[#allocation2 + $0x39] sm:$0xff] %vm315, %v302
        %322 = vst.msk [vmem:[#allocation2 + $0x49] sm:$0xff] %vm315, %v304
        %323 = vst.msk [vmem:[#allocation2 + $0x51] sm:$0xff] %vm315, %v306
        %v324 = vld [vmem:[#allocation2] sm:$0xff]
        %v325 = vld [vmem:[#allocation2 + $0x8] sm:$0xff]
        %s326 = smul.u32 %s27, 72
        %s327 = sld [smem:[#allocation7 + %s326]]
        %v328 = vstv %s327
        %v329 = vmul.f32 %v324, %v328
        %v330 = vmul.f32 %v325, %v328
        %v331 = vadd.f32 %v329, 0.0
        %v332 = vadd.f32 %v330, 0.0
        %s333 = sadd.s32 %s237, 1
        %s334 = smul.u32 %s333, 9
        %s335 = sld [smem:[#allocation7 + %s334]]
        %v336 = vstv %s335
        %v337 = vmul.f32 %v324, %v336
        %v338 = vmul.f32 %v325, %v336
        %v339 = vadd.f32 %v337, 0.0
        %v340 = vadd.f32 %v338, 0.0
        %s341 = sadd.s32 %s326, 1
        %s342 = sld [smem:[#allocation7 + %s341]]
        %v343 = vstv %s342
        %v344 = vmul.f32 %v324, %v343
        %v345 = vmul.f32 %v325, %v343
        %348 = vrot.lane.b32.xlu0 %v344, 127
        %v349 = vpop.permute.xlu0 %348
        %350 = vrot.lane.b32.xlu0 %v345, 127
        %v351 = vpop.permute.xlu0 %350
        %v354 = vadd.f32 %v331, %v349
        %v355 = vadd.f32 %v332, %v351
        %s356 = sadd.s32 %s334, 1
        %s357 = sld [smem:[#allocation7 + %s356]]
        %v358 = vstv %s357
        %v359 = vmul.f32 %v324, %v358
        %v360 = vmul.f32 %v325, %v358
        %363 = vrot.lane.b32.xlu0 %v359, 127
        %v364 = vpop.permute.xlu0 %363
        %365 = vrot.lane.b32.xlu0 %v360, 127
        %v366 = vpop.permute.xlu0 %365
        %v369 = vadd.f32 %v339, %v364
        %v370 = vadd.f32 %v340, %v366
        %s371 = sadd.s32 %s326, 2
        %s372 = sld [smem:[#allocation7 + %s371]]
        %v373 = vstv %s372
        %v374 = vmul.f32 %v324, %v373
        %v375 = vmul.f32 %v325, %v373
        %378 = vrot.lane.b32.xlu0 %v374, 126
        %v379 = vpop.permute.xlu0 %378
        %380 = vrot.lane.b32.xlu0 %v375, 126
        %v381 = vpop.permute.xlu0 %380
        %v384 = vadd.f32 %v354, %v379
        %v385 = vadd.f32 %v355, %v381
        %s386 = sadd.s32 %s334, 2
        %s387 = sld [smem:[#allocation7 + %s386]]
        %v388 = vstv %s387
        %v389 = vmul.f32 %v324, %v388
        %v390 = vmul.f32 %v325, %v388
        %393 = vrot.lane.b32.xlu0 %v389, 126
        %v394 = vpop.permute.xlu0 %393
        %395 = vrot.lane.b32.xlu0 %v390, 126
        %v396 = vpop.permute.xlu0 %395
        %v399 = vadd.f32 %v369, %v394
        %v400 = vadd.f32 %v370, %v396
        %v401 = vld [vmem:[#allocation2 + $0x1] sm:$0xff]
        %v402 = vld [vmem:[#allocation2 + $0x9] sm:$0xff]
        %s403 = sadd.s32 %s326, 3
        %s404 = sld [smem:[#allocation7 + %s403]]
        %v405 = vstv %s404
        %v406 = vmul.f32 %v401, %v405
        %v407 = vmul.f32 %v402, %v405
        %v408 = vadd.f32 %v384, %v406
        %v409 = vadd.f32 %v385, %v407
        %s410 = sadd.s32 %s334, 3
        %s411 = sld [smem:[#allocation7 + %s410]]
        %v412 = vstv %s411
        %v413 = vmul.f32 %v401, %v412
        %v414 = vmul.f32 %v402, %v412
        %v415 = vadd.f32 %v399, %v413
        %v416 = vadd.f32 %v400, %v414
        %s417 = sadd.s32 %s326, 4
        %s418 = sld [smem:[#allocation7 + %s417]]
        %v419 = vstv %s418
        %v420 = vmul.f32 %v401, %v419
        %v421 = vmul.f32 %v402, %v419
        %424 = vrot.lane.b32.xlu0 %v420, 127
        %v425 = vpop.permute.xlu0 %424
        %426 = vrot.lane.b32.xlu0 %v421, 127
        %v427 = vpop.permute.xlu0 %426
        %v430 = vadd.f32 %v408, %v425
        %v431 = vadd.f32 %v409, %v427
        %s432 = sadd.s32 %s334, 4
        %s433 = sld [smem:[#allocation7 + %s432]]
        %v434 = vstv %s433
        %v435 = vmul.f32 %v401, %v434
        %v436 = vmul.f32 %v402, %v434
        %439 = vrot.lane.b32.xlu0 %v435, 127
        %v440 = vpop.permute.xlu0 %439
        %441 = vrot.lane.b32.xlu0 %v436, 127
        %v442 = vpop.permute.xlu0 %441
        %v445 = vadd.f32 %v415, %v440
        %v446 = vadd.f32 %v416, %v442
        %s447 = sadd.s32 %s326, 5
        %s448 = sld [smem:[#allocation7 + %s447]]
        %v449 = vstv %s448
        %v450 = vmul.f32 %v401, %v449
        %v451 = vmul.f32 %v402, %v449
        %454 = vrot.lane.b32.xlu0 %v450, 126
        %v455 = vpop.permute.xlu0 %454
        %456 = vrot.lane.b32.xlu0 %v451, 126
        %v457 = vpop.permute.xlu0 %456
        %v460 = vadd.f32 %v430, %v455
        %v461 = vadd.f32 %v431, %v457
        %s462 = sadd.s32 %s334, 5
        %s463 = sld [smem:[#allocation7 + %s462]]
        %v464 = vstv %s463
        %v465 = vmul.f32 %v401, %v464
        %v466 = vmul.f32 %v402, %v464
        %469 = vrot.lane.b32.xlu0 %v465, 126
        %v470 = vpop.permute.xlu0 %469
        %471 = vrot.lane.b32.xlu0 %v466, 126
        %v472 = vpop.permute.xlu0 %471
        %v475 = vadd.f32 %v445, %v470
        %v476 = vadd.f32 %v446, %v472
        %v477 = vld [vmem:[#allocation2 + $0x2] sm:$0xff]
        %v478 = vld [vmem:[#allocation2 + $0xa] sm:$0xff]
        %s479 = sadd.s32 %s326, 6
        %s480 = sld [smem:[#allocation7 + %s479]]
        %v481 = vstv %s480
        %v482 = vmul.f32 %v477, %v481
        %v483 = vmul.f32 %v478, %v481
        %v484 = vadd.f32 %v460, %v482
        %v485 = vadd.f32 %v461, %v483
        %s486 = sadd.s32 %s334, 6
        %s487 = sld [smem:[#allocation7 + %s486]]
        %v488 = vstv %s487
        %v489 = vmul.f32 %v477, %v488
        %v490 = vmul.f32 %v478, %v488
        %v491 = vadd.f32 %v475, %v489
        %v492 = vadd.f32 %v476, %v490
        %s493 = sadd.s32 %s326, 7
        %s494 = sld [smem:[#allocation7 + %s493]]
        %v495 = vstv %s494
        %v496 = vmul.f32 %v477, %v495
        %v497 = vmul.f32 %v478, %v495
        %500 = vrot.lane.b32.xlu0 %v496, 127
        %v501 = vpop.permute.xlu0 %500
        %502 = vrot.lane.b32.xlu0 %v497, 127
        %v503 = vpop.permute.xlu0 %502
        %v506 = vadd.f32 %v484, %v501
        %v507 = vadd.f32 %v485, %v503
        %s508 = sadd.s32 %s334, 7
        %s509 = sld [smem:[#allocation7 + %s508]]
        %v510 = vstv %s509
        %v511 = vmul.f32 %v477, %v510
        %v512 = vmul.f32 %v478, %v510
        %515 = vrot.lane.b32.xlu0 %v511, 127
        %v516 = vpop.permute.xlu0 %515
        %517 = vrot.lane.b32.xlu0 %v512, 127
        %v518 = vpop.permute.xlu0 %517
        %v521 = vadd.f32 %v491, %v516
        %v522 = vadd.f32 %v492, %v518
        %s523 = sadd.s32 %s326, 8
        %s524 = sld [smem:[#allocation7 + %s523]]
        %v525 = vstv %s524
        %v526 = vmul.f32 %v477, %v525
        %v527 = vmul.f32 %v478, %v525
        %530 = vrot.lane.b32.xlu0 %v526, 126
        %v531 = vpop.permute.xlu0 %530
        %532 = vrot.lane.b32.xlu0 %v527, 126
        %v533 = vpop.permute.xlu0 %532
        %v536 = vadd.f32 %v506, %v531
        %v537 = vadd.f32 %v507, %v533
        %s538 = sadd.s32 %s334, 8
        %s539 = sld [smem:[#allocation7 + %s538]]
        %v540 = vstv %s539
        %v541 = vmul.f32 %v477, %v540
        %v542 = vmul.f32 %v478, %v540
        %545 = vrot.lane.b32.xlu0 %v541, 126
        %v546 = vpop.permute.xlu0 %545
        %547 = vrot.lane.b32.xlu0 %v542, 126
        %v548 = vpop.permute.xlu0 %547
        %v551 = vadd.f32 %v521, %v546
        %v552 = vadd.f32 %v522, %v548
        %s553 = sld [smem:[#allocation8 + %s237]]
        %v554 = vstv %s553
        %v555 = vadd.f32 %v536, %v554
        %v556 = vadd.f32 %v537, %v554
        %vm557 = vcmp.ge.f32.partialorder %v555, 0.0
        %vm558 = vcmp.ge.f32.partialorder %v556, 0.0
        %v559 = vmul.f32 %v555, 0.01
        %v560 = vmul.f32 %v556, 0.01
        %v561 = vsel %vm557, %v555, %v559
        %v562 = vsel %vm558, %v556, %v560
        %vm563 = vcmask 130048
        %564 = vst.msk [vmem:[%s234] sm:$0xff] %vm563, %v561
        %565 = vst.msk [vmem:[%s234 + $0x8] sm:$0xff] %vm563, %v562
        %s566 = sld [smem:[#allocation8 + %s333]]
        %v567 = vstv %s566
        %v568 = vadd.f32 %v551, %v567
        %v569 = vadd.f32 %v552, %v567
        %vm570 = vcmp.ge.f32.partialorder %v568, 0.0
        %vm571 = vcmp.ge.f32.partialorder %v569, 0.0
        %v572 = vmul.f32 %v568, 0.01
        %v573 = vmul.f32 %v569, 0.01
        %v574 = vsel %vm570, %v568, %v572
        %v575 = vsel %vm571, %v569, %v573
        %s576 = scalar_lea.vmem %s234, 16 [#allocation10]
        %577 = vst.msk [vmem:[%s576] sm:$0xff] %vm563, %v574
        %578 = vst.msk [vmem:[%s576 + $0x8] sm:$0xff] %vm563, %v575
        %s579 = scalar_lea.vmem [#allocation2], 24
        %v580 = vld [vmem:[%s579] sm:$0xff]
        %v581 = vld [vmem:[%s579 + $0x8] sm:$0xff]
        %s582 = sadd.s32 %s237, 2
        %s583 = smul.u32 %s582, 9
        %s584 = sld [smem:[#allocation7 + %s583]]
        %v585 = vstv %s584
        %v586 = vmul.f32 %v580, %v585
        %v587 = vmul.f32 %v581, %v585
        %v588 = vadd.f32 %v586, 0.0
        %v589 = vadd.f32 %v587, 0.0
        %s590 = sadd.s32 %s237, 3
        %s591 = smul.u32 %s590, 9
        %s592 = sld [smem:[#allocation7 + %s591]]
        %v593 = vstv %s592
        %v594 = vmul.f32 %v580, %v593
        %v595 = vmul.f32 %v581, %v593
        %v596 = vadd.f32 %v594, 0.0
        %v597 = vadd.f32 %v595, 0.0
        %s598 = sadd.s32 %s583, 1
        %s599 = sld [smem:[#allocation7 + %s598]]
        %v600 = vstv %s599
        %v601 = vmul.f32 %v580, %v600
        %v602 = vmul.f32 %v581, %v600
        %605 = vrot.lane.b32.xlu0 %v601, 127
        %v606 = vpop.permute.xlu0 %605
        %607 = vrot.lane.b32.xlu0 %v602, 127
        %v608 = vpop.permute.xlu0 %607
        %v611 = vadd.f32 %v588, %v606
        %v612 = vadd.f32 %v589, %v608
        %s613 = sadd.s32 %s591, 1
        %s614 = sld [smem:[#allocation7 + %s613]]
        %v615 = vstv %s614
        %v616 = vmul.f32 %v580, %v615
        %v617 = vmul.f32 %v581, %v615
        %620 = vrot.lane.b32.xlu0 %v616, 127
        %v621 = vpop.permute.xlu0 %620
        %622 = vrot.lane.b32.xlu0 %v617, 127
        %v623 = vpop.permute.xlu0 %622
        %v626 = vadd.f32 %v596, %v621
        %v627 = vadd.f32 %v597, %v623
        %s628 = sadd.s32 %s583, 2
        %s629 = sld [smem:[#allocation7 + %s628]]
        %v630 = vstv %s629
        %v631 = vmul.f32 %v580, %v630
        %v632 = vmul.f32 %v581, %v630
        %635 = vrot.lane.b32.xlu0 %v631, 126
        %v636 = vpop.permute.xlu0 %635
        %637 = vrot.lane.b32.xlu0 %v632, 126
        %v638 = vpop.permute.xlu0 %637
        %v641 = vadd.f32 %v611, %v636
        %v642 = vadd.f32 %v612, %v638
        %s643 = sadd.s32 %s591, 2
        %s644 = sld [smem:[#allocation7 + %s643]]
        %v645 = vstv %s644
        %v646 = vmul.f32 %v580, %v645
        %v647 = vmul.f32 %v581, %v645
        %650 = vrot.lane.b32.xlu0 %v646, 126
        %v651 = vpop.permute.xlu0 %650
        %652 = vrot.lane.b32.xlu0 %v647, 126
        %v653 = vpop.permute.xlu0 %652
        %v656 = vadd.f32 %v626, %v651
        %v657 = vadd.f32 %v627, %v653
        %v658 = vld [vmem:[%s579 + $0x1] sm:$0xff]
        %v659 = vld [vmem:[%s579 + $0x9] sm:$0xff]
        %s660 = sadd.s32 %s583, 3
        %s661 = sld [smem:[#allocation7 + %s660]]
        %v662 = vstv %s661
        %v663 = vmul.f32 %v658, %v662
        %v664 = vmul.f32 %v659, %v662
        %v665 = vadd.f32 %v641, %v663
        %v666 = vadd.f32 %v642, %v664
        %s667 = sadd.s32 %s591, 3
        %s668 = sld [smem:[#allocation7 + %s667]]
        %v669 = vstv %s668
        %v670 = vmul.f32 %v658, %v669
        %v671 = vmul.f32 %v659, %v669
        %v672 = vadd.f32 %v656, %v670
        %v673 = vadd.f32 %v657, %v671
        %s674 = sadd.s32 %s583, 4
        %s675 = sld [smem:[#allocation7 + %s674]]
        %v676 = vstv %s675
        %v677 = vmul.f32 %v658, %v676
        %v678 = vmul.f32 %v659, %v676
        %681 = vrot.lane.b32.xlu0 %v677, 127
        %v682 = vpop.permute.xlu0 %681
        %683 = vrot.lane.b32.xlu0 %v678, 127
        %v684 = vpop.permute.xlu0 %683
        %v687 = vadd.f32 %v665, %v682
        %v688 = vadd.f32 %v666, %v684
        %s689 = sadd.s32 %s591, 4
        %s690 = sld [smem:[#allocation7 + %s689]]
        %v691 = vstv %s690
        %v692 = vmul.f32 %v658, %v691
        %v693 = vmul.f32 %v659, %v691
        %696 = vrot.lane.b32.xlu0 %v692, 127
        %v697 = vpop.permute.xlu0 %696
        %698 = vrot.lane.b32.xlu0 %v693, 127
        %v699 = vpop.permute.xlu0 %698
        %v702 = vadd.f32 %v672, %v697
        %v703 = vadd.f32 %v673, %v699
        %s704 = sadd.s32 %s583, 5
        %s705 = sld [smem:[#allocation7 + %s704]]
        %v706 = vstv %s705
        %v707 = vmul.f32 %v658, %v706
        %v708 = vmul.f32 %v659, %v706
        %711 = vrot.lane.b32.xlu0 %v707, 126
        %v712 = vpop.permute.xlu0 %711
        %713 = vrot.lane.b32.xlu0 %v708, 126
        %v714 = vpop.permute.xlu0 %713
        %v717 = vadd.f32 %v687, %v712
        %v718 = vadd.f32 %v688, %v714
        %s719 = sadd.s32 %s591, 5
        %s720 = sld [smem:[#allocation7 + %s719]]
        %v721 = vstv %s720
        %v722 = vmul.f32 %v658, %v721
        %v723 = vmul.f32 %v659, %v721
        %726 = vrot.lane.b32.xlu0 %v722, 126
        %v727 = vpop.permute.xlu0 %726
        %728 = vrot.lane.b32.xlu0 %v723, 126
        %v729 = vpop.permute.xlu0 %728
        %v732 = vadd.f32 %v702, %v727
        %v733 = vadd.f32 %v703, %v729
        %v734 = vld [vmem:[%s579 + $0x2] sm:$0xff]
        %v735 = vld [vmem:[%s579 + $0xa] sm:$0xff]
        %s736 = sadd.s32 %s583, 6
        %s737 = sld [smem:[#allocation7 + %s736]]
        %v738 = vstv %s737
        %v739 = vmul.f32 %v734, %v738
        %v740 = vmul.f32 %v735, %v738
        %v741 = vadd.f32 %v717, %v739
        %v742 = vadd.f32 %v718, %v740
        %s743 = sadd.s32 %s591, 6
        %s744 = sld [smem:[#allocation7 + %s743]]
        %v745 = vstv %s744
        %v746 = vmul.f32 %v734, %v745
        %v747 = vmul.f32 %v735, %v745
        %v748 = vadd.f32 %v732, %v746
        %v749 = vadd.f32 %v733, %v747
        %s750 = sadd.s32 %s583, 7
        %s751 = sld [smem:[#allocation7 + %s750]]
        %v752 = vstv %s751
        %v753 = vmul.f32 %v734, %v752
        %v754 = vmul.f32 %v735, %v752
        %757 = vrot.lane.b32.xlu0 %v753, 127
        %v758 = vpop.permute.xlu0 %757
        %759 = vrot.lane.b32.xlu0 %v754, 127
        %v760 = vpop.permute.xlu0 %759
        %v763 = vadd.f32 %v741, %v758
        %v764 = vadd.f32 %v742, %v760
        %s765 = sadd.s32 %s591, 7
        %s766 = sld [smem:[#allocation7 + %s765]]
        %v767 = vstv %s766
        %v768 = vmul.f32 %v734, %v767
        %v769 = vmul.f32 %v735, %v767
        %772 = vrot.lane.b32.xlu0 %v768, 127
        %v773 = vpop.permute.xlu0 %772
        %774 = vrot.lane.b32.xlu0 %v769, 127
        %v775 = vpop.permute.xlu0 %774
        %v778 = vadd.f32 %v748, %v773
        %v779 = vadd.f32 %v749, %v775
        %s780 = sadd.s32 %s583, 8
        %s781 = sld [smem:[#allocation7 + %s780]]
        %v782 = vstv %s781
        %v783 = vmul.f32 %v734, %v782
        %v784 = vmul.f32 %v735, %v782
        %787 = vrot.lane.b32.xlu0 %v783, 126
        %v788 = vpop.permute.xlu0 %787
        %789 = vrot.lane.b32.xlu0 %v784, 126
        %v790 = vpop.permute.xlu0 %789
        %v793 = vadd.f32 %v763, %v788
        %v794 = vadd.f32 %v764, %v790
        %s795 = sadd.s32 %s591, 8
        %s796 = sld [smem:[#allocation7 + %s795]]
        %v797 = vstv %s796
        %v798 = vmul.f32 %v734, %v797
        %v799 = vmul.f32 %v735, %v797
        %802 = vrot.lane.b32.xlu0 %v798, 126
        %v803 = vpop.permute.xlu0 %802
        %804 = vrot.lane.b32.xlu0 %v799, 126
        %v805 = vpop.permute.xlu0 %804
        %v808 = vadd.f32 %v778, %v803
        %v809 = vadd.f32 %v779, %v805
        %s810 = sld [smem:[#allocation8 + %s582]]
        %v811 = vstv %s810
        %v812 = vadd.f32 %v793, %v811
        %v813 = vadd.f32 %v794, %v811
        %vm814 = vcmp.ge.f32.partialorder %v812, 0.0
        %vm815 = vcmp.ge.f32.partialorder %v813, 0.0
        %v816 = vmul.f32 %v812, 0.01
        %v817 = vmul.f32 %v813, 0.01
        %v818 = vsel %vm814, %v812, %v816
        %v819 = vsel %vm815, %v813, %v817
        %s820 = scalar_lea.vmem %s234, 32 [#allocation10]
        %821 = vst.msk [vmem:[%s820] sm:$0xff] %vm563, %v818
        %822 = vst.msk [vmem:[%s820 + $0x8] sm:$0xff] %vm563, %v819
        %s823 = sld [smem:[#allocation8 + %s590]]
        %v824 = vstv %s823
        %v825 = vadd.f32 %v808, %v824
        %v826 = vadd.f32 %v809, %v824
        %vm827 = vcmp.ge.f32.partialorder %v825, 0.0
        %vm828 = vcmp.ge.f32.partialorder %v826, 0.0
        %v829 = vmul.f32 %v825, 0.01
        %v830 = vmul.f32 %v826, 0.01
        %v831 = vsel %vm827, %v825, %v829
        %v832 = vsel %vm828, %v826, %v830
        %s833 = scalar_lea.vmem %s234, 48 [#allocation10]
        %834 = vst.msk [vmem:[%s833] sm:$0xff] %vm563, %v831
        %835 = vst.msk [vmem:[%s833 + $0x8] sm:$0xff] %vm563, %v832
        %s836 = scalar_lea.vmem [#allocation2], 48
        %v837 = vld [vmem:[%s836] sm:$0xff]
        %v838 = vld [vmem:[%s836 + $0x8] sm:$0xff]
        %s839 = sadd.s32 %s237, 4
        %s840 = smul.u32 %s839, 9
        %s841 = sld [smem:[#allocation7 + %s840]]
        %v842 = vstv %s841
        %v843 = vmul.f32 %v837, %v842
        %v844 = vmul.f32 %v838, %v842
        %v845 = vadd.f32 %v843, 0.0
        %v846 = vadd.f32 %v844, 0.0
        %s847 = sadd.s32 %s237, 5
        %s848 = smul.u32 %s847, 9
        %s849 = sld [smem:[#allocation7 + %s848]]
        %v850 = vstv %s849
        %v851 = vmul.f32 %v837, %v850
        %v852 = vmul.f32 %v838, %v850
        %v853 = vadd.f32 %v851, 0.0
        %v854 = vadd.f32 %v852, 0.0
        %s855 = sadd.s32 %s840, 1
        %s856 = sld [smem:[#allocation7 + %s855]]
        %v857 = vstv %s856
        %v858 = vmul.f32 %v837, %v857
        %v859 = vmul.f32 %v838, %v857
        %862 = vrot.lane.b32.xlu0 %v858, 127
        %v863 = vpop.permute.xlu0 %862
        %864 = vrot.lane.b32.xlu0 %v859, 127
        %v865 = vpop.permute.xlu0 %864
        %v868 = vadd.f32 %v845, %v863
        %v869 = vadd.f32 %v846, %v865
        %s870 = sadd.s32 %s848, 1
        %s871 = sld [smem:[#allocation7 + %s870]]
        %v872 = vstv %s871
        %v873 = vmul.f32 %v837, %v872
        %v874 = vmul.f32 %v838, %v872
        %877 = vrot.lane.b32.xlu0 %v873, 127
        %v878 = vpop.permute.xlu0 %877
        %879 = vrot.lane.b32.xlu0 %v874, 127
        %v880 = vpop.permute.xlu0 %879
        %v883 = vadd.f32 %v853, %v878
        %v884 = vadd.f32 %v854, %v880
        %s885 = sadd.s32 %s840, 2
        %s886 = sld [smem:[#allocation7 + %s885]]
        %v887 = vstv %s886
        %v888 = vmul.f32 %v837, %v887
        %v889 = vmul.f32 %v838, %v887
        %892 = vrot.lane.b32.xlu0 %v888, 126
        %v893 = vpop.permute.xlu0 %892
        %894 = vrot.lane.b32.xlu0 %v889, 126
        %v895 = vpop.permute.xlu0 %894
        %v898 = vadd.f32 %v868, %v893
        %v899 = vadd.f32 %v869, %v895
        %s900 = sadd.s32 %s848, 2
        %s901 = sld [smem:[#allocation7 + %s900]]
        %v902 = vstv %s901
        %v903 = vmul.f32 %v837, %v902
        %v904 = vmul.f32 %v838, %v902
        %907 = vrot.lane.b32.xlu0 %v903, 126
        %v908 = vpop.permute.xlu0 %907
        %909 = vrot.lane.b32.xlu0 %v904, 126
        %v910 = vpop.permute.xlu0 %909
        %v913 = vadd.f32 %v883, %v908
        %v914 = vadd.f32 %v884, %v910
        %v915 = vld [vmem:[%s836 + $0x1] sm:$0xff]
        %v916 = vld [vmem:[%s836 + $0x9] sm:$0xff]
        %s917 = sadd.s32 %s840, 3
        %s918 = sld [smem:[#allocation7 + %s917]]
        %v919 = vstv %s918
        %v920 = vmul.f32 %v915, %v919
        %v921 = vmul.f32 %v916, %v919
        %v922 = vadd.f32 %v898, %v920
        %v923 = vadd.f32 %v899, %v921
        %s924 = sadd.s32 %s848, 3
        %s925 = sld [smem:[#allocation7 + %s924]]
        %v926 = vstv %s925
        %v927 = vmul.f32 %v915, %v926
        %v928 = vmul.f32 %v916, %v926
        %v929 = vadd.f32 %v913, %v927
        %v930 = vadd.f32 %v914, %v928
        %s931 = sadd.s32 %s840, 4
        %s932 = sld [smem:[#allocation7 + %s931]]
        %v933 = vstv %s932
        %v934 = vmul.f32 %v915, %v933
        %v935 = vmul.f32 %v916, %v933
        %938 = vrot.lane.b32.xlu0 %v934, 127
        %v939 = vpop.permute.xlu0 %938
        %940 = vrot.lane.b32.xlu0 %v935, 127
        %v941 = vpop.permute.xlu0 %940
        %v944 = vadd.f32 %v922, %v939
        %v945 = vadd.f32 %v923, %v941
        %s946 = sadd.s32 %s848, 4
        %s947 = sld [smem:[#allocation7 + %s946]]
        %v948 = vstv %s947
        %v949 = vmul.f32 %v915, %v948
        %v950 = vmul.f32 %v916, %v948
        %953 = vrot.lane.b32.xlu0 %v949, 127
        %v954 = vpop.permute.xlu0 %953
        %955 = vrot.lane.b32.xlu0 %v950, 127
        %v956 = vpop.permute.xlu0 %955
        %v959 = vadd.f32 %v929, %v954
        %v960 = vadd.f32 %v930, %v956
        %s961 = sadd.s32 %s840, 5
        %s962 = sld [smem:[#allocation7 + %s961]]
        %v963 = vstv %s962
        %v964 = vmul.f32 %v915, %v963
        %v965 = vmul.f32 %v916, %v963
        %968 = vrot.lane.b32.xlu0 %v964, 126
        %v969 = vpop.permute.xlu0 %968
        %970 = vrot.lane.b32.xlu0 %v965, 126
        %v971 = vpop.permute.xlu0 %970
        %v974 = vadd.f32 %v944, %v969
        %v975 = vadd.f32 %v945, %v971
        %s976 = sadd.s32 %s848, 5
        %s977 = sld [smem:[#allocation7 + %s976]]
        %v978 = vstv %s977
        %v979 = vmul.f32 %v915, %v978
        %v980 = vmul.f32 %v916, %v978
        %983 = vrot.lane.b32.xlu0 %v979, 126
        %v984 = vpop.permute.xlu0 %983
        %985 = vrot.lane.b32.xlu0 %v980, 126
        %v986 = vpop.permute.xlu0 %985
        %v989 = vadd.f32 %v959, %v984
        %v990 = vadd.f32 %v960, %v986
        %v991 = vld [vmem:[%s836 + $0x2] sm:$0xff]
        %v992 = vld [vmem:[%s836 + $0xa] sm:$0xff]
        %s993 = sadd.s32 %s840, 6
        %s994 = sld [smem:[#allocation7 + %s993]]
        %v995 = vstv %s994
        %v996 = vmul.f32 %v991, %v995
        %v997 = vmul.f32 %v992, %v995
        %v998 = vadd.f32 %v974, %v996
        %v999 = vadd.f32 %v975, %v997
        %s1000 = sadd.s32 %s848, 6
        %s1001 = sld [smem:[#allocation7 + %s1000]]
        %v1002 = vstv %s1001
        %v1003 = vmul.f32 %v991, %v1002
        %v1004 = vmul.f32 %v992, %v1002
        %v1005 = vadd.f32 %v989, %v1003
        %v1006 = vadd.f32 %v990, %v1004
        %s1007 = sadd.s32 %s840, 7
        %s1008 = sld [smem:[#allocation7 + %s1007]]
        %v1009 = vstv %s1008
        %v1010 = vmul.f32 %v991, %v1009
        %v1011 = vmul.f32 %v992, %v1009
        %1014 = vrot.lane.b32.xlu0 %v1010, 127
        %v1015 = vpop.permute.xlu0 %1014
        %1016 = vrot.lane.b32.xlu0 %v1011, 127
        %v1017 = vpop.permute.xlu0 %1016
        %v1020 = vadd.f32 %v998, %v1015
        %v1021 = vadd.f32 %v999, %v1017
        %s1022 = sadd.s32 %s848, 7
        %s1023 = sld [smem:[#allocation7 + %s1022]]
        %v1024 = vstv %s1023
        %v1025 = vmul.f32 %v991, %v1024
        %v1026 = vmul.f32 %v992, %v1024
        %1029 = vrot.lane.b32.xlu0 %v1025, 127
        %v1030 = vpop.permute.xlu0 %1029
        %1031 = vrot.lane.b32.xlu0 %v1026, 127
        %v1032 = vpop.permute.xlu0 %1031
        %v1035 = vadd.f32 %v1005, %v1030
        %v1036 = vadd.f32 %v1006, %v1032
        %s1037 = sadd.s32 %s840, 8
        %s1038 = sld [smem:[#allocation7 + %s1037]]
        %v1039 = vstv %s1038
        %v1040 = vmul.f32 %v991, %v1039
        %v1041 = vmul.f32 %v992, %v1039
        %1044 = vrot.lane.b32.xlu0 %v1040, 126
        %v1045 = vpop.permute.xlu0 %1044
        %1046 = vrot.lane.b32.xlu0 %v1041, 126
        %v1047 = vpop.permute.xlu0 %1046
        %v1050 = vadd.f32 %v1020, %v1045
        %v1051 = vadd.f32 %v1021, %v1047
        %s1052 = sadd.s32 %s848, 8
        %s1053 = sld [smem:[#allocation7 + %s1052]]
        %v1054 = vstv %s1053
        %v1055 = vmul.f32 %v991, %v1054
        %v1056 = vmul.f32 %v992, %v1054
        %1059 = vrot.lane.b32.xlu0 %v1055, 126
        %v1060 = vpop.permute.xlu0 %1059
        %1061 = vrot.lane.b32.xlu0 %v1056, 126
        %v1062 = vpop.permute.xlu0 %1061
        %v1065 = vadd.f32 %v1035, %v1060
        %v1066 = vadd.f32 %v1036, %v1062
        %s1067 = sld [smem:[#allocation8 + %s839]]
        %v1068 = vstv %s1067
        %v1069 = vadd.f32 %v1050, %v1068
        %v1070 = vadd.f32 %v1051, %v1068
        %vm1071 = vcmp.ge.f32.partialorder %v1069, 0.0
        %vm1072 = vcmp.ge.f32.partialorder %v1070, 0.0
        %v1073 = vmul.f32 %v1069, 0.01
        %v1074 = vmul.f32 %v1070, 0.01
        %v1075 = vsel %vm1071, %v1069, %v1073
        %v1076 = vsel %vm1072, %v1070, %v1074
        %s1077 = scalar_lea.vmem %s234, 64 [#allocation10]
        %1078 = vst.msk [vmem:[%s1077] sm:$0xff] %vm563, %v1075
        %1079 = vst.msk [vmem:[%s1077 + $0x8] sm:$0xff] %vm563, %v1076
        %s1080 = sld [smem:[#allocation8 + %s847]]
        %v1081 = vstv %s1080
        %v1082 = vadd.f32 %v1065, %v1081
        %v1083 = vadd.f32 %v1066, %v1081
        %vm1084 = vcmp.ge.f32.partialorder %v1082, 0.0
        %vm1085 = vcmp.ge.f32.partialorder %v1083, 0.0
        %v1086 = vmul.f32 %v1082, 0.01
        %v1087 = vmul.f32 %v1083, 0.01
        %v1088 = vsel %vm1084, %v1082, %v1086
        %v1089 = vsel %vm1085, %v1083, %v1087
        %s1090 = scalar_lea.vmem %s234, 80 [#allocation10]
        %1091 = vst.msk [vmem:[%s1090] sm:$0xff] %vm563, %v1088
        %1092 = vst.msk [vmem:[%s1090 + $0x8] sm:$0xff] %vm563, %v1089
        %s1093 = scalar_lea.vmem [#allocation2], 72
        %v1094 = vld [vmem:[%s1093] sm:$0xff]
        %v1095 = vld [vmem:[%s1093 + $0x8] sm:$0xff]
        %s1096 = sadd.s32 %s237, 6
        %s1097 = smul.u32 %s1096, 9
        %s1098 = sld [smem:[#allocation7 + %s1097]]
        %v1099 = vstv %s1098
        %v1100 = vmul.f32 %v1094, %v1099
        %v1101 = vmul.f32 %v1095, %v1099
        %v1102 = vadd.f32 %v1100, 0.0
        %v1103 = vadd.f32 %v1101, 0.0
        %s1104 = sadd.s32 %s237, 7
        %s1105 = smul.u32 %s1104, 9
        %s1106 = sld [smem:[#allocation7 + %s1105]]
        %v1107 = vstv %s1106
        %v1108 = vmul.f32 %v1094, %v1107
        %v1109 = vmul.f32 %v1095, %v1107
        %v1110 = vadd.f32 %v1108, 0.0
        %v1111 = vadd.f32 %v1109, 0.0
        %s1112 = sadd.s32 %s1097, 1
        %s1113 = sld [smem:[#allocation7 + %s1112]]
        %v1114 = vstv %s1113
        %v1115 = vmul.f32 %v1094, %v1114
        %v1116 = vmul.f32 %v1095, %v1114
        %1119 = vrot.lane.b32.xlu0 %v1115, 127
        %v1120 = vpop.permute.xlu0 %1119
        %1121 = vrot.lane.b32.xlu0 %v1116, 127
        %v1122 = vpop.permute.xlu0 %1121
        %v1125 = vadd.f32 %v1102, %v1120
        %v1126 = vadd.f32 %v1103, %v1122
        %s1127 = sadd.s32 %s1105, 1
        %s1128 = sld [smem:[#allocation7 + %s1127]]
        %v1129 = vstv %s1128
        %v1130 = vmul.f32 %v1094, %v1129
        %v1131 = vmul.f32 %v1095, %v1129
        %1134 = vrot.lane.b32.xlu0 %v1130, 127
        %v1135 = vpop.permute.xlu0 %1134
        %1136 = vrot.lane.b32.xlu0 %v1131, 127
        %v1137 = vpop.permute.xlu0 %1136
        %v1140 = vadd.f32 %v1110, %v1135
        %v1141 = vadd.f32 %v1111, %v1137
        %s1142 = sadd.s32 %s1097, 2
        %s1143 = sld [smem:[#allocation7 + %s1142]]
        %v1144 = vstv %s1143
        %v1145 = vmul.f32 %v1094, %v1144
        %v1146 = vmul.f32 %v1095, %v1144
        %1149 = vrot.lane.b32.xlu0 %v1145, 126
        %v1150 = vpop.permute.xlu0 %1149
        %1151 = vrot.lane.b32.xlu0 %v1146, 126
        %v1152 = vpop.permute.xlu0 %1151
        %v1155 = vadd.f32 %v1125, %v1150
        %v1156 = vadd.f32 %v1126, %v1152
        %s1157 = sadd.s32 %s1105, 2
        %s1158 = sld [smem:[#allocation7 + %s1157]]
        %v1159 = vstv %s1158
        %v1160 = vmul.f32 %v1094, %v1159
        %v1161 = vmul.f32 %v1095, %v1159
        %1164 = vrot.lane.b32.xlu0 %v1160, 126
        %v1165 = vpop.permute.xlu0 %1164
        %1166 = vrot.lane.b32.xlu0 %v1161, 126
        %v1167 = vpop.permute.xlu0 %1166
        %v1170 = vadd.f32 %v1140, %v1165
        %v1171 = vadd.f32 %v1141, %v1167
        %v1172 = vld [vmem:[%s1093 + $0x1] sm:$0xff]
        %v1173 = vld [vmem:[%s1093 + $0x9] sm:$0xff]
        %s1174 = sadd.s32 %s1097, 3
        %s1175 = sld [smem:[#allocation7 + %s1174]]
        %v1176 = vstv %s1175
        %v1177 = vmul.f32 %v1172, %v1176
        %v1178 = vmul.f32 %v1173, %v1176
        %v1179 = vadd.f32 %v1155, %v1177
        %v1180 = vadd.f32 %v1156, %v1178
        %s1181 = sadd.s32 %s1105, 3
        %s1182 = sld [smem:[#allocation7 + %s1181]]
        %v1183 = vstv %s1182
        %v1184 = vmul.f32 %v1172, %v1183
        %v1185 = vmul.f32 %v1173, %v1183
        %v1186 = vadd.f32 %v1170, %v1184
        %v1187 = vadd.f32 %v1171, %v1185
        %s1188 = sadd.s32 %s1097, 4
        %s1189 = sld [smem:[#allocation7 + %s1188]]
        %v1190 = vstv %s1189
        %v1191 = vmul.f32 %v1172, %v1190
        %v1192 = vmul.f32 %v1173, %v1190
        %1195 = vrot.lane.b32.xlu0 %v1191, 127
        %v1196 = vpop.permute.xlu0 %1195
        %1197 = vrot.lane.b32.xlu0 %v1192, 127
        %v1198 = vpop.permute.xlu0 %1197
        %v1201 = vadd.f32 %v1179, %v1196
        %v1202 = vadd.f32 %v1180, %v1198
        %s1203 = sadd.s32 %s1105, 4
        %s1204 = sld [smem:[#allocation7 + %s1203]]
        %v1205 = vstv %s1204
        %v1206 = vmul.f32 %v1172, %v1205
        %v1207 = vmul.f32 %v1173, %v1205
        %1210 = vrot.lane.b32.xlu0 %v1206, 127
        %v1211 = vpop.permute.xlu0 %1210
        %1212 = vrot.lane.b32.xlu0 %v1207, 127
        %v1213 = vpop.permute.xlu0 %1212
        %v1216 = vadd.f32 %v1186, %v1211
        %v1217 = vadd.f32 %v1187, %v1213
        %s1218 = sadd.s32 %s1097, 5
        %s1219 = sld [smem:[#allocation7 + %s1218]]
        %v1220 = vstv %s1219
        %v1221 = vmul.f32 %v1172, %v1220
        %v1222 = vmul.f32 %v1173, %v1220
        %1225 = vrot.lane.b32.xlu0 %v1221, 126
        %v1226 = vpop.permute.xlu0 %1225
        %1227 = vrot.lane.b32.xlu0 %v1222, 126
        %v1228 = vpop.permute.xlu0 %1227
        %v1231 = vadd.f32 %v1201, %v1226
        %v1232 = vadd.f32 %v1202, %v1228
        %s1233 = sadd.s32 %s1105, 5
        %s1234 = sld [smem:[#allocation7 + %s1233]]
        %v1235 = vstv %s1234
        %v1236 = vmul.f32 %v1172, %v1235
        %v1237 = vmul.f32 %v1173, %v1235
        %1240 = vrot.lane.b32.xlu0 %v1236, 126
        %v1241 = vpop.permute.xlu0 %1240
        %1242 = vrot.lane.b32.xlu0 %v1237, 126
        %v1243 = vpop.permute.xlu0 %1242
        %v1246 = vadd.f32 %v1216, %v1241
        %v1247 = vadd.f32 %v1217, %v1243
        %v1248 = vld [vmem:[%s1093 + $0x2] sm:$0xff]
        %v1249 = vld [vmem:[%s1093 + $0xa] sm:$0xff]
        %s1250 = sadd.s32 %s1097, 6
        %s1251 = sld [smem:[#allocation7 + %s1250]]
        %v1252 = vstv %s1251
        %v1253 = vmul.f32 %v1248, %v1252
        %v1254 = vmul.f32 %v1249, %v1252
        %v1255 = vadd.f32 %v1231, %v1253
        %v1256 = vadd.f32 %v1232, %v1254
        %s1257 = sadd.s32 %s1105, 6
        %s1258 = sld [smem:[#allocation7 + %s1257]]
        %v1259 = vstv %s1258
        %v1260 = vmul.f32 %v1248, %v1259
        %v1261 = vmul.f32 %v1249, %v1259
        %v1262 = vadd.f32 %v1246, %v1260
        %v1263 = vadd.f32 %v1247, %v1261
        %s1264 = sadd.s32 %s1097, 7
        %s1265 = sld [smem:[#allocation7 + %s1264]]
        %v1266 = vstv %s1265
        %v1267 = vmul.f32 %v1248, %v1266
        %v1268 = vmul.f32 %v1249, %v1266
        %1271 = vrot.lane.b32.xlu0 %v1267, 127
        %v1272 = vpop.permute.xlu0 %1271
        %1273 = vrot.lane.b32.xlu0 %v1268, 127
        %v1274 = vpop.permute.xlu0 %1273
        %v1277 = vadd.f32 %v1255, %v1272
        %v1278 = vadd.f32 %v1256, %v1274
        %s1279 = sadd.s32 %s1105, 7
        %s1280 = sld [smem:[#allocation7 + %s1279]]
        %v1281 = vstv %s1280
        %v1282 = vmul.f32 %v1248, %v1281
        %v1283 = vmul.f32 %v1249, %v1281
        %1286 = vrot.lane.b32.xlu0 %v1282, 127
        %v1287 = vpop.permute.xlu0 %1286
        %1288 = vrot.lane.b32.xlu0 %v1283, 127
        %v1289 = vpop.permute.xlu0 %1288
        %v1292 = vadd.f32 %v1262, %v1287
        %v1293 = vadd.f32 %v1263, %v1289
        %s1294 = sadd.s32 %s1097, 8
        %s1295 = sld [smem:[#allocation7 + %s1294]]
        %v1296 = vstv %s1295
        %v1297 = vmul.f32 %v1248, %v1296
        %v1298 = vmul.f32 %v1249, %v1296
        %1301 = vrot.lane.b32.xlu0 %v1297, 126
        %v1302 = vpop.permute.xlu0 %1301
        %1303 = vrot.lane.b32.xlu0 %v1298, 126
        %v1304 = vpop.permute.xlu0 %1303
        %v1307 = vadd.f32 %v1277, %v1302
        %v1308 = vadd.f32 %v1278, %v1304
        %s1309 = sadd.s32 %s1105, 8
        %s1310 = sld [smem:[#allocation7 + %s1309]]
        %v1311 = vstv %s1310
        %v1312 = vmul.f32 %v1248, %v1311
        %v1313 = vmul.f32 %v1249, %v1311
        %1316 = vrot.lane.b32.xlu0 %v1312, 126
        %v1317 = vpop.permute.xlu0 %1316
        %1318 = vrot.lane.b32.xlu0 %v1313, 126
        %v1319 = vpop.permute.xlu0 %1318
        %v1322 = vadd.f32 %v1292, %v1317
        %v1323 = vadd.f32 %v1293, %v1319
        %s1324 = sld [smem:[#allocation8 + %s1096]]
        %v1325 = vstv %s1324
        %v1326 = vadd.f32 %v1307, %v1325
        %v1327 = vadd.f32 %v1308, %v1325
        %vm1328 = vcmp.ge.f32.partialorder %v1326, 0.0
        %vm1329 = vcmp.ge.f32.partialorder %v1327, 0.0
        %v1330 = vmul.f32 %v1326, 0.01
        %v1331 = vmul.f32 %v1327, 0.01
        %v1332 = vsel %vm1328, %v1326, %v1330
        %v1333 = vsel %vm1329, %v1327, %v1331
        %s1334 = scalar_lea.vmem %s234, 96 [#allocation10]
        %1335 = vst.msk [vmem:[%s1334] sm:$0xff] %vm563, %v1332
        %1336 = vst.msk [vmem:[%s1334 + $0x8] sm:$0xff] %vm563, %v1333
        %s1337 = sld [smem:[#allocation8 + %s1104]]
        %v1338 = vstv %s1337
        %v1339 = vadd.f32 %v1322, %v1338
        %v1340 = vadd.f32 %v1323, %v1338
        %vm1341 = vcmp.ge.f32.partialorder %v1339, 0.0
        %vm1342 = vcmp.ge.f32.partialorder %v1340, 0.0
        %v1343 = vmul.f32 %v1339, 0.01
        %v1344 = vmul.f32 %v1340, 0.01
        %v1345 = vsel %vm1341, %v1339, %v1343
        %v1346 = vsel %vm1342, %v1340, %v1344
        %s1347 = scalar_lea.vmem %s234, 112 [#allocation10]
        %1348 = vst.msk [vmem:[%s1347] sm:$0xff] %vm563, %v1345
        %1349 = vst.msk [vmem:[%s1347 + $0x8] sm:$0xff] %vm563, %v1346
        %s1350 = sand.u32 %s114, 1
        %s1351 = scalar_lea.sflag [#allocation5], %s1350
        %s1352 = sand.u32 %s114, 1
        %s1353 = smul.addr %s1352, 128
        %s1354 = scalar_lea.vmem [#allocation10], %s1353
        // Predicated region
        $region45: #{tpu_custom_call.1} parent=31 // pred_check
          %p1355 = pneg %p124
        $region46: #{tpu_custom_call.1} parent=31 // pred_check_branch
          %1357 = sbr.rel (%p1355) target = $region48
        $region47: #{tpu_custom_call.1} parent=31 // pred_region
          %s1358 = smul.u32 8, %s27
          %s1360 = ssub.s32 2048, 2048
          %1361 = vsyncadd %s1351, %s1360
          %s1362 = smul.addr %s1358, 2
          %s1363 = smul.addr %s26, 16
          %s1364 = sadd.s32 %s1362, %s1363
          %s1365 = smul.addr %s1364, 128
          %s1366 = scalar_lea.hbm %s3, %s1365
          %s1367 = sshll.u32 %s1354, 4
          %s1368 = int_to_ptr.vmem [resolvable:$true] %s1367
          %1373 = dma.vmem_to_hbm [thread:$0]  %s1368, 2048, %s1366, %s1351, 128, 128, 8
        $region48: #{tpu_custom_call.1} parent=31 // pred_fallthru
          _
      $region32: #{tpu_custom_call.1} parent=5 // pred_fallthru
        _
      %p1374 = scmp.le.s32.totalorder 2, %s17
      // Predicated region
      $region49: #{tpu_custom_call.1} parent=5 // pred_check
        %p1375 = pneg %p1374
      $region50: #{tpu_custom_call.1} parent=5 // pred_check_branch
        %1377 = sbr.rel (%p1375) target = $region52
      $region51: #{tpu_custom_call.1} parent=5 // pred_region
        %s1378 = ssub.s32 %s17, 2
        // Predicated region
        $region53: #{tpu_custom_call.1} parent=51 // pred_check
          %p1379 = pneg %p130
        $region54: #{tpu_custom_call.1} parent=51 // pred_check_branch
          %1381 = sbr.rel (%p1379) target = $region56
        $region55: #{tpu_custom_call.1} parent=51 // pred_region
          %s1382 = sand.u32 %s115, 1
          %s1383 = scalar_lea.sflag [#allocation5], %s1382
          %s1384 = sand.u32 %s115, 1
          %s1385 = smul.addr %s1384, 128
          %s1386 = scalar_lea.vmem [#allocation10], %s1385
          %1387 = dma.done %s1383, 2048
        $region56: #{tpu_custom_call.1} parent=51 // pred_fallthru
          _
      $region52: #{tpu_custom_call.1} parent=5 // pred_fallthru
        _
    $region6: #{tpu_custom_call.1} parent=1 // loop_footer
      %s21 = sadd.s32 1, %s17
    $region7: #{tpu_custom_call.1} parent=1 // loop_footer_branch
      %16 = sbr.rel target = $region3
    $region8: #{tpu_custom_call.1} parent=1 // loop_exit
      _
    %1388 = vsyncpa [#allocation4], 1
    %s1389 = scalar_lea.sflag [#allocation4], 1
    %1390 = vsyncpa %s1389, 1
    %1391 = vsyncpa [#allocation5], 1
    %s1392 = scalar_lea.sflag [#allocation5], 1
    %1393 = vsyncpa %s1392, 1
    %1394 = vsyncpa [#allocation6], 1
    %s1395 = scalar_lea.sflag [#allocation6], 1
    %1396 = vsyncpa %s1395, 1
    %1397 = vsyncpa [#allocation9], 1

</llo_original>
